<compile_context>
chip_gen: v6e
topology: v6e:2x2x1
jax: 0.10.0
libtpu: 0.0.40
codegen_flags: <defaults>
</compile_context>

<pallas_src>
import jax
import jax.numpy as jnp
from jax import lax
from jax.experimental import pallas as pl
from jax.experimental.pallas import tpu as pltpu


def _round_up(n, m):
    return ((n + m - 1) // m) * m


def _gru_cell(gi_t, h_prev, whh, bhn_b, H):
    """One GRU step, PyTorch gate order (r, z, n), gates packed in one 3H-wide block.

    gi_t already contains b_ih (+ b_hh for the r/z gates, folded in the wrapper);
    bhn_b is the broadcast n-gate hidden bias, applied inside r*(...) like nn.GRU.
    Only the h_prev @ whh matmul sits on the serial recurrence path.
    """
    gh = jnp.dot(h_prev.astype(whh.dtype), whh, preferred_element_type=jnp.float32)
    r = jax.nn.sigmoid(gi_t[:, 0 * H:1 * H] + gh[:, 0 * H:1 * H])
    z = jax.nn.sigmoid(gi_t[:, 1 * H:2 * H] + gh[:, 1 * H:2 * H])
    n = jnp.tanh(gi_t[:, 2 * H:3 * H] + r * (gh[:, 2 * H:3 * H] + bhn_b))
    return (1.0 - z) * n + z * h_prev


def encoder_kernel(x_ref,                                  # (T, BB, I) f32, time-major chunk
                   wih0_ref, whh0_ref, b0_ref, bhn0_ref,   # layer 0 (bf16 W, f32 biases)
                   wih1_ref, whh1_ref, b1_ref, bhn1_ref,   # layer 1
                   wfc_ref, bfc_ref,                       # fc: (H, Op) bf16, (1, Op) f32
                   out_ref,                                # (BB, Op) f32, lane-dense
                   seq_ref):                               # scratch (T, BB, H) f32
    T, BB, I = x_ref.shape
    H = whh0_ref.shape[0]

    # ---- layer 0: hoisted input->hidden matmul: ONE (T*BB, I) x (I, 3H) MXU op ----
    x = x_ref[...].reshape(T * BB, I).astype(jnp.bfloat16)
    gi0 = (jnp.dot(x, wih0_ref[...], preferred_element_type=jnp.float32)
           + b0_ref[...]).reshape(T, BB, 3 * H)            # kept in vregs (no VMEM trip)

    whh0 = whh0_ref[...]                                   # (H, 3H) bf16, ~2 vregs live
    bhn0 = jnp.broadcast_to(bhn0_ref[...], (BB, H))        # hoisted broadcast

    h = jnp.zeros((BB, H), jnp.float32)                    # carried in vregs
    for t in range(T):                                     # fully unrolled (T static)
        h = _gru_cell(gi0[t], h, whh0, bhn0, H)
        seq_ref[t] = h                                     # aligned (8,H) store, off the
                                                           # h critical path

    # ---- layer 1: hoisted input->hidden matmul over the layer-0 hidden sequence ----
    seq = seq_ref[...].reshape(T * BB, H).astype(jnp.bfloat16)
    gi1 = (jnp.dot(seq, wih1_ref[...], preferred_element_type=jnp.float32)
           + b1_ref[...]).reshape(T, BB, 3 * H)

    whh1 = whh1_ref[...]
    bhn1 = jnp.broadcast_to(bhn1_ref[...], (BB, H))

    h1 = jnp.zeros((BB, H), jnp.float32)
    for t in range(T):
        h1 = _gru_cell(gi1[t], h1, whh1, bhn1, H)

    # ---- fc on the last timestep's layer-1 hidden state (lane-dense padded output) ----
    out_ref[...] = (jnp.dot(h1.astype(jnp.bfloat16), wfc_ref[...],
                            preferred_element_type=jnp.float32)
                    + bfc_ref[...])


def encoder_forward(x, params):
    """x: (B, T, I) float32. Returns (B, output_size) float32."""
    B, T, I = x.shape
    H = params["whh0"].shape[0]
    O = params["wfc"].shape[1]

    BB = 8                                   # batch chunk = one f32 sublane tile
    nb = pl.cdiv(B, BB)
    Bp = nb * BB
    Op = _round_up(O, 128)

    # Wrapper-side layout plumbing (free): time-major, batch padded to whole 8-row chunks.
    x_tm = jnp.transpose(x, (1, 0, 2))                        # (T, B, I)
    x_tm = jnp.pad(x_tm, ((0, 0), (0, Bp - B), (0, 0)))       # (T, Bp, I)

    def prep_layer(wih, whh, bih, bhh):
        # Fold the r/z hidden biases into the input bias (exact); keep the n-gate hidden
        # bias separate because PyTorch applies b_hn inside the r*(...) factor.
        b = bih + jnp.concatenate(
            [bhh[:, :2 * H], jnp.zeros((1, H), bih.dtype)], axis=1)
        return (wih.astype(jnp.bfloat16), whh.astype(jnp.bfloat16),
                b, bhh[:, 2 * H:3 * H])

    wih0, whh0, b0, bhn0 = prep_layer(params["wih0"], params["whh0"],
                                      params["bih0"], params["bhh0"])
    wih1, whh1, b1, bhn1 = prep_layer(params["wih1"], params["whh1"],
                                      params["bih1"], params["bhh1"])
    wfc = jnp.pad(params["wfc"], ((0, 0), (0, Op - O))).astype(jnp.bfloat16)
    bfc = jnp.pad(params["bfc"], ((0, 0), (0, Op - O)))

    def full(arr):                            # whole-array block, same every grid step
        return pl.BlockSpec(arr.shape, lambda b: (0,) * arr.ndim)

    out_p = pl.pallas_call(
        encoder_kernel,
        out_shape=jax.ShapeDtypeStruct((Bp, Op), jnp.float32),
        grid=(nb,),
        in_specs=[pl.BlockSpec((T, BB, I), lambda b: (0, b, 0)),
                  full(wih0), full(whh0), full(b0), full(bhn0),
                  full(wih1), full(whh1), full(b1), full(bhn1),
                  full(wfc), full(bfc)],
        out_specs=pl.BlockSpec((BB, Op), lambda b: (b, 0)),
        scratch_shapes=[pltpu.VMEM((T, BB, H), jnp.float32)],   # layer-0 hidden sequence
        compiler_params=pltpu.CompilerParams(
            dimension_semantics=("parallel",),          # batch chunks -> 2 TCs on v7x
            vmem_limit_bytes=32 * 1024 * 1024),
    )(x_tm, wih0, whh0, b0, bhn0, wih1, whh1, b1, bhn1, wfc, bfc)

    return out_p[:B, :O]


def encoder_reference(x, params, bf16_matmul=False):
    """Pure-JAX reference with PyTorch GRU semantics (scan over time, unfused biases).

    bf16_matmul=True mirrors the kernel's declared precision (bf16 MXU operands,
    f32 accumulation); bf16_matmul=False is the full-f32 reference.
    """
    B, T, I = x.shape
    H = params["whh0"].shape[0]

    if bf16_matmul:
        def mm(a, b):
            return jnp.dot(a.astype(jnp.bfloat16), b.astype(jnp.bfloat16),
                           preferred_element_type=jnp.float32)
    else:
        def mm(a, b):
            return jnp.dot(a, b, precision=lax.Precision.HIGHEST)

    def run_layer(seq_btF, wih, whh, bih, bhh):
        def step(h, x_t):
            gi = mm(x_t, wih) + bih
            gh = mm(h, whh) + bhh
            r = jax.nn.sigmoid(gi[:, :H] + gh[:, :H])
            z = jax.nn.sigmoid(gi[:, H:2 * H] + gh[:, H:2 * H])
            n = jnp.tanh(gi[:, 2 * H:] + r * gh[:, 2 * H:])
            h_new = (1.0 - z) * n + z * h
            return h_new, h_new

        h0 = jnp.zeros((B, H), jnp.float32)
        h_last, outs = lax.scan(step, h0, jnp.transpose(seq_btF, (1, 0, 2)))
        return jnp.transpose(outs, (1, 0, 2)), h_last

    seq1, _ = run_layer(x, params["wih0"], params["whh0"],
                        params["bih0"], params["bhh0"])
    _, h_last = run_layer(seq1, params["wih1"], params["whh1"],
                          params["bih1"], params["bhh1"])
    return mm(h_last, params["wfc"]) + params["bfc"]


def init_params(key, input_size, hidden_size, output_size):
    """Deterministic synthetic params, uniform(-1/sqrt(H), 1/sqrt(H)) like PyTorch.
    Weights stored pre-transposed: (in, 3H) / (H, 3H) / (H, O), gate order (r, z, n)."""
    H = hidden_size
    bound = 1.0 / jnp.sqrt(jnp.float32(H))
    keys = jax.random.split(key, 10)

    def u(k, shape):
        return jax.random.uniform(k, shape, jnp.float32, -bound, bound)

    return {
        "wih0": u(keys[0], (input_size, 3 * H)),
        "whh0": u(keys[1], (H, 3 * H)),
        "bih0": u(keys[2], (1, 3 * H)),
        "bhh0": u(keys[3], (1, 3 * H)),
        "wih1": u(keys[4], (H, 3 * H)),
        "whh1": u(keys[5], (H, 3 * H)),
        "bih1": u(keys[6], (1, 3 * H)),
        "bhh1": u(keys[7], (1, 3 * H)),
        "wfc": u(keys[8], (H, output_size)),
        "bfc": u(keys[9], (1, output_size)),
    }


if __name__ == "__main__":
    B, T, I, H, O = 2, 8, 4, 32, 4

    key = jax.random.PRNGKey(0)
    k_x, k_p = jax.random.split(key)
    x = jax.random.normal(k_x, (B, T, I), jnp.float32)
    params = init_params(k_p, input_size=I, hidden_size=H, output_size=O)

    out = jax.block_until_ready(encoder_forward(x, params))

    ref_bf16 = encoder_reference(x, params, bf16_matmul=True)   # same declared precision
    ref_f32 = encoder_reference(x, params, bf16_matmul=False)   # full-f32 PyTorch semantics

    assert out.shape == (B, O)
    # Implementation equivalence at the kernel's precision (bf16 operands, f32 accum):
    assert jnp.allclose(out, ref_bf16, atol=5e-3, rtol=5e-3), (out, ref_bf16)
    # Semantics sanity vs. full-f32 reference; bound reflects bf16 MXU operands:
    assert jnp.allclose(out, ref_f32, atol=6e-2, rtol=6e-2), (out, ref_f32)

    print("KERNEL_OK")
</pallas_src>

<mosaic_0001>
module attributes {stable_mosaic.version = 11 : i64} {
  func.func @encoder_kernel(%arg0: i32, %arg1: memref<8x8x4xf32, #tpu.memory_space<vmem>>, %arg2: memref<4x96xbf16, #tpu.memory_space<vmem>>, %arg3: memref<32x96xbf16, #tpu.memory_space<vmem>>, %arg4: memref<1x96xf32, #tpu.memory_space<vmem>>, %arg5: memref<1x32xf32, #tpu.memory_space<vmem>>, %arg6: memref<32x96xbf16, #tpu.memory_space<vmem>>, %arg7: memref<32x96xbf16, #tpu.memory_space<vmem>>, %arg8: memref<1x96xf32, #tpu.memory_space<vmem>>, %arg9: memref<1x32xf32, #tpu.memory_space<vmem>>, %arg10: memref<32x128xbf16, #tpu.memory_space<vmem>>, %arg11: memref<1x128xf32, #tpu.memory_space<vmem>>, %arg12: memref<8x128xf32, #tpu.memory_space<vmem>>, %arg13: memref<8x8x32xf32, #tpu.memory_space<vmem>>) attributes {dimension_semantics = [#tpu.dimension_semantics<parallel>], iteration_bounds = array<i64: 1>, scalar_prefetch = 0 : i64, scratch_operands = 1 : i64, tpu.core_type = #tpu.core_type<tc>, window_params = [{transform_indices = @transform_0, window_bounds = array<i64: 8, 8, 4>}, {pipeline_mode = #tpu.pipeline_mode<synchronous>, transform_indices = @transform_1, window_bounds = array<i64: 4, 96>}, {pipeline_mode = #tpu.pipeline_mode<synchronous>, transform_indices = @transform_2, window_bounds = array<i64: 32, 96>}, {pipeline_mode = #tpu.pipeline_mode<synchronous>, transform_indices = @transform_3, window_bounds = array<i64: 1, 96>}, {pipeline_mode = #tpu.pipeline_mode<synchronous>, transform_indices = @transform_4, window_bounds = array<i64: 1, 32>}, {pipeline_mode = #tpu.pipeline_mode<synchronous>, transform_indices = @transform_5, window_bounds = array<i64: 32, 96>}, {pipeline_mode = #tpu.pipeline_mode<synchronous>, transform_indices = @transform_6, window_bounds = array<i64: 32, 96>}, {pipeline_mode = #tpu.pipeline_mode<synchronous>, transform_indices = @transform_7, window_bounds = array<i64: 1, 96>}, {pipeline_mode = #tpu.pipeline_mode<synchronous>, transform_indices = @transform_8, window_bounds = array<i64: 1, 32>}, {pipeline_mode = #tpu.pipeline_mode<synchronous>, transform_indices = @transform_9, window_bounds = array<i64: 32, 128>}, {pipeline_mode = #tpu.pipeline_mode<synchronous>, transform_indices = @transform_10, window_bounds = array<i64: 1, 128>}, {transform_indices = @transform_11, window_bounds = array<i64: 8, 128>}]} {
    %c0 = arith.constant 0 : index
    %c0_0 = arith.constant 0 : index
    %c0_1 = arith.constant 0 : index
    %0 = vector.load %arg1[%c0, %c0_0, %c0_1] : memref<8x8x4xf32, #tpu.memory_space<vmem>>, vector<8x8x4xf32>
    %1 = vector.shape_cast %0 : vector<8x8x4xf32> to vector<64x4xf32>
    %2 = arith.truncf %1 : vector<64x4xf32> to vector<64x4xbf16>
    %c0_2 = arith.constant 0 : index
    %c0_3 = arith.constant 0 : index
    %3 = vector.load %arg2[%c0_2, %c0_3] : memref<4x96xbf16, #tpu.memory_space<vmem>>, vector<4x96xbf16>
    %cst = arith.constant dense<0.000000e+00> : vector<64x96xf32>
    %4 = tpu.matmul %2, %3, %cst {dimension_numbers = #tpu.dot_dimension_numbers<[1], [0], [0], [1], [0, 0, 1, 1], [], []>} : vector<64x4xbf16>, vector<4x96xbf16>, vector<64x96xf32> -> vector<64x96xf32>
    %c0_4 = arith.constant 0 : index
    %c0_5 = arith.constant 0 : index
    %5 = vector.load %arg4[%c0_4, %c0_5] : memref<1x96xf32, #tpu.memory_space<vmem>>, vector<1x96xf32>
    %6 = vector.broadcast %5 : vector<1x96xf32> to vector<64x96xf32>
    %7 = arith.addf %4, %6 : vector<64x96xf32>
    %8 = vector.shape_cast %7 : vector<64x96xf32> to vector<8x8x96xf32>
    %c0_6 = arith.constant 0 : index
    %c0_7 = arith.constant 0 : index
    %9 = vector.load %arg3[%c0_6, %c0_7] : memref<32x96xbf16, #tpu.memory_space<vmem>>, vector<32x96xbf16>
    %c0_8 = arith.constant 0 : index
    %c0_9 = arith.constant 0 : index
    %10 = vector.load %arg5[%c0_8, %c0_9] : memref<1x32xf32, #tpu.memory_space<vmem>>, vector<1x32xf32>
    %11 = vector.shape_cast %10 : vector<1x32xf32> to vector<1x32xf32>
    %12 = vector.broadcast %11 : vector<1x32xf32> to vector<8x32xf32>
    %cst_10 = arith.constant 0.000000e+00 : f32
    %13 = vector.broadcast %cst_10 : f32 to vector<8x32xf32>
    %14 = vector.extract_strided_slice %8 {offsets = [0, 0, 0], sizes = [1, 8, 96], strides = [1, 1, 1]} : vector<8x8x96xf32> to vector<1x8x96xf32>
    %15 = vector.shape_cast %14 : vector<1x8x96xf32> to vector<8x96xf32>
    %16 = arith.truncf %13 : vector<8x32xf32> to vector<8x32xbf16>
    %cst_11 = arith.constant dense<0.000000e+00> : vector<8x96xf32>
    %17 = tpu.matmul %16, %9, %cst_11 {dimension_numbers = #tpu.dot_dimension_numbers<[1], [0], [0], [1], [0, 0, 1, 1], [], []>} : vector<8x32xbf16>, vector<32x96xbf16>, vector<8x96xf32> -> vector<8x96xf32>
    %18 = vector.extract_strided_slice %15 {offsets = [0, 0], sizes = [8, 32], strides = [1, 1]} : vector<8x96xf32> to vector<8x32xf32>
    %19 = vector.extract_strided_slice %17 {offsets = [0, 0], sizes = [8, 32], strides = [1, 1]} : vector<8x96xf32> to vector<8x32xf32>
    %20 = arith.addf %18, %19 : vector<8x32xf32>
    %21 = arith.negf %20 : vector<8x32xf32>
    %22 = math.exp %21 : vector<8x32xf32>
    %cst_12 = arith.constant 1.000000e+00 : f32
    %23 = vector.broadcast %cst_12 : f32 to vector<8x32xf32>
    %24 = arith.addf %23, %22 : vector<8x32xf32>
    %25 = arith.divf %23, %24 : vector<8x32xf32>
    %26 = vector.extract_strided_slice %15 {offsets = [0, 32], sizes = [8, 32], strides = [1, 1]} : vector<8x96xf32> to vector<8x32xf32>
    %27 = vector.extract_strided_slice %17 {offsets = [0, 32], sizes = [8, 32], strides = [1, 1]} : vector<8x96xf32> to vector<8x32xf32>
    %28 = arith.addf %26, %27 : vector<8x32xf32>
    %29 = arith.negf %28 : vector<8x32xf32>
    %30 = math.exp %29 : vector<8x32xf32>
    %cst_13 = arith.constant 1.000000e+00 : f32
    %31 = vector.broadcast %cst_13 : f32 to vector<8x32xf32>
    %32 = arith.addf %31, %30 : vector<8x32xf32>
    %33 = arith.divf %31, %32 : vector<8x32xf32>
    %34 = vector.extract_strided_slice %15 {offsets = [0, 64], sizes = [8, 32], strides = [1, 1]} : vector<8x96xf32> to vector<8x32xf32>
    %35 = vector.extract_strided_slice %17 {offsets = [0, 64], sizes = [8, 32], strides = [1, 1]} : vector<8x96xf32> to vector<8x32xf32>
    %36 = arith.addf %35, %12 : vector<8x32xf32>
    %37 = arith.mulf %25, %36 : vector<8x32xf32>
    %38 = arith.addf %34, %37 : vector<8x32xf32>
    %39 = math.tanh %38 : vector<8x32xf32>
    %cst_14 = arith.constant 1.000000e+00 : f32
    %40 = vector.broadcast %cst_14 : f32 to vector<8x32xf32>
    %41 = arith.subf %40, %33 : vector<8x32xf32>
    %42 = arith.mulf %41, %39 : vector<8x32xf32>
    %43 = arith.mulf %33, %13 : vector<8x32xf32>
    %44 = arith.addf %42, %43 : vector<8x32xf32>
    %c0_15 = arith.constant 0 : index
    %c0_16 = arith.constant 0 : index
    %c0_17 = arith.constant 0 : index
    %45 = vector.load %arg13[%c0_15, %c0_16, %c0_17] : memref<8x8x32xf32, #tpu.memory_space<vmem>>, vector<1x8x32xf32>
    %46 = vector.shape_cast %45 : vector<1x8x32xf32> to vector<8x32xf32>
    %47 = vector.shape_cast %44 : vector<8x32xf32> to vector<1x8x32xf32>
    tpu.vector_store %arg13[%c0_15, %c0_16, %c0_17], %47 {strides = array<i32>} : memref<8x8x32xf32, #tpu.memory_space<vmem>>, vector<1x8x32xf32>,
    %48 = vector.extract_strided_slice %8 {offsets = [1, 0, 0], sizes = [1, 8, 96], strides = [1, 1, 1]} : vector<8x8x96xf32> to vector<1x8x96xf32>
    %49 = vector.shape_cast %48 : vector<1x8x96xf32> to vector<8x96xf32>
    %50 = arith.truncf %44 : vector<8x32xf32> to vector<8x32xbf16>
    %cst_18 = arith.constant dense<0.000000e+00> : vector<8x96xf32>
    %51 = tpu.matmul %50, %9, %cst_18 {dimension_numbers = #tpu.dot_dimension_numbers<[1], [0], [0], [1], [0, 0, 1, 1], [], []>} : vector<8x32xbf16>, vector<32x96xbf16>, vector<8x96xf32> -> vector<8x96xf32>
    %52 = vector.extract_strided_slice %49 {offsets = [0, 0], sizes = [8, 32], strides = [1, 1]} : vector<8x96xf32> to vector<8x32xf32>
    %53 = vector.extract_strided_slice %51 {offsets = [0, 0], sizes = [8, 32], strides = [1, 1]} : vector<8x96xf32> to vector<8x32xf32>
    %54 = arith.addf %52, %53 : vector<8x32xf32>
    %55 = arith.negf %54 : vector<8x32xf32>
    %56 = math.exp %55 : vector<8x32xf32>
    %cst_19 = arith.constant 1.000000e+00 : f32
    %57 = vector.broadcast %cst_19 : f32 to vector<8x32xf32>
    %58 = arith.addf %57, %56 : vector<8x32xf32>
    %59 = arith.divf %57, %58 : vector<8x32xf32>
    %60 = vector.extract_strided_slice %49 {offsets = [0, 32], sizes = [8, 32], strides = [1, 1]} : vector<8x96xf32> to vector<8x32xf32>
    %61 = vector.extract_strided_slice %51 {offsets = [0, 32], sizes = [8, 32], strides = [1, 1]} : vector<8x96xf32> to vector<8x32xf32>
    %62 = arith.addf %60, %61 : vector<8x32xf32>
    %63 = arith.negf %62 : vector<8x32xf32>
    %64 = math.exp %63 : vector<8x32xf32>
    %cst_20 = arith.constant 1.000000e+00 : f32
    %65 = vector.broadcast %cst_20 : f32 to vector<8x32xf32>
    %66 = arith.addf %65, %64 : vector<8x32xf32>
    %67 = arith.divf %65, %66 : vector<8x32xf32>
    %68 = vector.extract_strided_slice %49 {offsets = [0, 64], sizes = [8, 32], strides = [1, 1]} : vector<8x96xf32> to vector<8x32xf32>
    %69 = vector.extract_strided_slice %51 {offsets = [0, 64], sizes = [8, 32], strides = [1, 1]} : vector<8x96xf32> to vector<8x32xf32>
    %70 = arith.addf %69, %12 : vector<8x32xf32>
    %71 = arith.mulf %59, %70 : vector<8x32xf32>
    %72 = arith.addf %68, %71 : vector<8x32xf32>
    %73 = math.tanh %72 : vector<8x32xf32>
    %cst_21 = arith.constant 1.000000e+00 : f32
    %74 = vector.broadcast %cst_21 : f32 to vector<8x32xf32>
    %75 = arith.subf %74, %67 : vector<8x32xf32>
    %76 = arith.mulf %75, %73 : vector<8x32xf32>
    %77 = arith.mulf %67, %44 : vector<8x32xf32>
    %78 = arith.addf %76, %77 : vector<8x32xf32>
    %c1 = arith.constant 1 : index
    %c0_22 = arith.constant 0 : index
    %c0_23 = arith.constant 0 : index
    %79 = vector.load %arg13[%c1, %c0_22, %c0_23] : memref<8x8x32xf32, #tpu.memory_space<vmem>>, vector<1x8x32xf32>
    %80 = vector.shape_cast %79 : vector<1x8x32xf32> to vector<8x32xf32>
    %81 = vector.shape_cast %78 : vector<8x32xf32> to vector<1x8x32xf32>
    tpu.vector_store %arg13[%c1, %c0_22, %c0_23], %81 {strides = array<i32>} : memref<8x8x32xf32, #tpu.memory_space<vmem>>, vector<1x8x32xf32>,
    %82 = vector.extract_strided_slice %8 {offsets = [2, 0, 0], sizes = [1, 8, 96], strides = [1, 1, 1]} : vector<8x8x96xf32> to vector<1x8x96xf32>
    %83 = vector.shape_cast %82 : vector<1x8x96xf32> to vector<8x96xf32>
    %84 = arith.truncf %78 : vector<8x32xf32> to vector<8x32xbf16>
    %cst_24 = arith.constant dense<0.000000e+00> : vector<8x96xf32>
    %85 = tpu.matmul %84, %9, %cst_24 {dimension_numbers = #tpu.dot_dimension_numbers<[1], [0], [0], [1], [0, 0, 1, 1], [], []>} : vector<8x32xbf16>, vector<32x96xbf16>, vector<8x96xf32> -> vector<8x96xf32>
    %86 = vector.extract_strided_slice %83 {offsets = [0, 0], sizes = [8, 32], strides = [1, 1]} : vector<8x96xf32> to vector<8x32xf32>
    %87 = vector.extract_strided_slice %85 {offsets = [0, 0], sizes = [8, 32], strides = [1, 1]} : vector<8x96xf32> to vector<8x32xf32>
    %88 = arith.addf %86, %87 : vector<8x32xf32>
    %89 = arith.negf %88 : vector<8x32xf32>
    %90 = math.exp %89 : vector<8x32xf32>
    %cst_25 = arith.constant 1.000000e+00 : f32
    %91 = vector.broadcast %cst_25 : f32 to vector<8x32xf32>
    %92 = arith.addf %91, %90 : vector<8x32xf32>
    %93 = arith.divf %91, %92 : vector<8x32xf32>
    %94 = vector.extract_strided_slice %83 {offsets = [0, 32], sizes = [8, 32], strides = [1, 1]} : vector<8x96xf32> to vector<8x32xf32>
    %95 = vector.extract_strided_slice %85 {offsets = [0, 32], sizes = [8, 32], strides = [1, 1]} : vector<8x96xf32> to vector<8x32xf32>
    %96 = arith.addf %94, %95 : vector<8x32xf32>
    %97 = arith.negf %96 : vector<8x32xf32>
    %98 = math.exp %97 : vector<8x32xf32>
    %cst_26 = arith.constant 1.000000e+00 : f32
    %99 = vector.broadcast %cst_26 : f32 to vector<8x32xf32>
    %100 = arith.addf %99, %98 : vector<8x32xf32>
    %101 = arith.divf %99, %100 : vector<8x32xf32>
    %102 = vector.extract_strided_slice %83 {offsets = [0, 64], sizes = [8, 32], strides = [1, 1]} : vector<8x96xf32> to vector<8x32xf32>
    %103 = vector.extract_strided_slice %85 {offsets = [0, 64], sizes = [8, 32], strides = [1, 1]} : vector<8x96xf32> to vector<8x32xf32>
    %104 = arith.addf %103, %12 : vector<8x32xf32>
    %105 = arith.mulf %93, %104 : vector<8x32xf32>
    %106 = arith.addf %102, %105 : vector<8x32xf32>
    %107 = math.tanh %106 : vector<8x32xf32>
    %cst_27 = arith.constant 1.000000e+00 : f32
    %108 = vector.broadcast %cst_27 : f32 to vector<8x32xf32>
    %109 = arith.subf %108, %101 : vector<8x32xf32>
    %110 = arith.mulf %109, %107 : vector<8x32xf32>
    %111 = arith.mulf %101, %78 : vector<8x32xf32>
    %112 = arith.addf %110, %111 : vector<8x32xf32>
    %c2 = arith.constant 2 : index
    %c0_28 = arith.constant 0 : index
    %c0_29 = arith.constant 0 : index
    %113 = vector.load %arg13[%c2, %c0_28, %c0_29] : memref<8x8x32xf32, #tpu.memory_space<vmem>>, vector<1x8x32xf32>
    %114 = vector.shape_cast %113 : vector<1x8x32xf32> to vector<8x32xf32>
    %115 = vector.shape_cast %112 : vector<8x32xf32> to vector<1x8x32xf32>
    tpu.vector_store %arg13[%c2, %c0_28, %c0_29], %115 {strides = array<i32>} : memref<8x8x32xf32, #tpu.memory_space<vmem>>, vector<1x8x32xf32>,
    %116 = vector.extract_strided_slice %8 {offsets = [3, 0, 0], sizes = [1, 8, 96], strides = [1, 1, 1]} : vector<8x8x96xf32> to vector<1x8x96xf32>
    %117 = vector.shape_cast %116 : vector<1x8x96xf32> to vector<8x96xf32>
    %118 = arith.truncf %112 : vector<8x32xf32> to vector<8x32xbf16>
    %cst_30 = arith.constant dense<0.000000e+00> : vector<8x96xf32>
    %119 = tpu.matmul %118, %9, %cst_30 {dimension_numbers = #tpu.dot_dimension_numbers<[1], [0], [0], [1], [0, 0, 1, 1], [], []>} : vector<8x32xbf16>, vector<32x96xbf16>, vector<8x96xf32> -> vector<8x96xf32>
    %120 = vector.extract_strided_slice %117 {offsets = [0, 0], sizes = [8, 32], strides = [1, 1]} : vector<8x96xf32> to vector<8x32xf32>
    %121 = vector.extract_strided_slice %119 {offsets = [0, 0], sizes = [8, 32], strides = [1, 1]} : vector<8x96xf32> to vector<8x32xf32>
    %122 = arith.addf %120, %121 : vector<8x32xf32>
    %123 = arith.negf %122 : vector<8x32xf32>
    %124 = math.exp %123 : vector<8x32xf32>
    %cst_31 = arith.constant 1.000000e+00 : f32
    %125 = vector.broadcast %cst_31 : f32 to vector<8x32xf32>
    %126 = arith.addf %125, %124 : vector<8x32xf32>
    %127 = arith.divf %125, %126 : vector<8x32xf32>
    %128 = vector.extract_strided_slice %117 {offsets = [0, 32], sizes = [8, 32], strides = [1, 1]} : vector<8x96xf32> to vector<8x32xf32>
    %129 = vector.extract_strided_slice %119 {offsets = [0, 32], sizes = [8, 32], strides = [1, 1]} : vector<8x96xf32> to vector<8x32xf32>
    %130 = arith.addf %128, %129 : vector<8x32xf32>
    %131 = arith.negf %130 : vector<8x32xf32>
    %132 = math.exp %131 : vector<8x32xf32>
    %cst_32 = arith.constant 1.000000e+00 : f32
    %133 = vector.broadcast %cst_32 : f32 to vector<8x32xf32>
    %134 = arith.addf %133, %132 : vector<8x32xf32>
    %135 = arith.divf %133, %134 : vector<8x32xf32>
    %136 = vector.extract_strided_slice %117 {offsets = [0, 64], sizes = [8, 32], strides = [1, 1]} : vector<8x96xf32> to vector<8x32xf32>
    %137 = vector.extract_strided_slice %119 {offsets = [0, 64], sizes = [8, 32], strides = [1, 1]} : vector<8x96xf32> to vector<8x32xf32>
    %138 = arith.addf %137, %12 : vector<8x32xf32>
    %139 = arith.mulf %127, %138 : vector<8x32xf32>
    %140 = arith.addf %136, %139 : vector<8x32xf32>
    %141 = math.tanh %140 : vector<8x32xf32>
    %cst_33 = arith.constant 1.000000e+00 : f32
    %142 = vector.broadcast %cst_33 : f32 to vector<8x32xf32>
    %143 = arith.subf %142, %135 : vector<8x32xf32>
    %144 = arith.mulf %143, %141 : vector<8x32xf32>
    %145 = arith.mulf %135, %112 : vector<8x32xf32>
    %146 = arith.addf %144, %145 : vector<8x32xf32>
    %c3 = arith.constant 3 : index
    %c0_34 = arith.constant 0 : index
    %c0_35 = arith.constant 0 : index
    %147 = vector.load %arg13[%c3, %c0_34, %c0_35] : memref<8x8x32xf32, #tpu.memory_space<vmem>>, vector<1x8x32xf32>
    %148 = vector.shape_cast %147 : vector<1x8x32xf32> to vector<8x32xf32>
    %149 = vector.shape_cast %146 : vector<8x32xf32> to vector<1x8x32xf32>
    tpu.vector_store %arg13[%c3, %c0_34, %c0_35], %149 {strides = array<i32>} : memref<8x8x32xf32, #tpu.memory_space<vmem>>, vector<1x8x32xf32>,
    %150 = vector.extract_strided_slice %8 {offsets = [4, 0, 0], sizes = [1, 8, 96], strides = [1, 1, 1]} : vector<8x8x96xf32> to vector<1x8x96xf32>
    %151 = vector.shape_cast %150 : vector<1x8x96xf32> to vector<8x96xf32>
    %152 = arith.truncf %146 : vector<8x32xf32> to vector<8x32xbf16>
    %cst_36 = arith.constant dense<0.000000e+00> : vector<8x96xf32>
    %153 = tpu.matmul %152, %9, %cst_36 {dimension_numbers = #tpu.dot_dimension_numbers<[1], [0], [0], [1], [0, 0, 1, 1], [], []>} : vector<8x32xbf16>, vector<32x96xbf16>, vector<8x96xf32> -> vector<8x96xf32>
    %154 = vector.extract_strided_slice %151 {offsets = [0, 0], sizes = [8, 32], strides = [1, 1]} : vector<8x96xf32> to vector<8x32xf32>
    %155 = vector.extract_strided_slice %153 {offsets = [0, 0], sizes = [8, 32], strides = [1, 1]} : vector<8x96xf32> to vector<8x32xf32>
    %156 = arith.addf %154, %155 : vector<8x32xf32>
    %157 = arith.negf %156 : vector<8x32xf32>
    %158 = math.exp %157 : vector<8x32xf32>
    %cst_37 = arith.constant 1.000000e+00 : f32
    %159 = vector.broadcast %cst_37 : f32 to vector<8x32xf32>
    %160 = arith.addf %159, %158 : vector<8x32xf32>
    %161 = arith.divf %159, %160 : vector<8x32xf32>
    %162 = vector.extract_strided_slice %151 {offsets = [0, 32], sizes = [8, 32], strides = [1, 1]} : vector<8x96xf32> to vector<8x32xf32>
    %163 = vector.extract_strided_slice %153 {offsets = [0, 32], sizes = [8, 32], strides = [1, 1]} : vector<8x96xf32> to vector<8x32xf32>
    %164 = arith.addf %162, %163 : vector<8x32xf32>
    %165 = arith.negf %164 : vector<8x32xf32>
    %166 = math.exp %165 : vector<8x32xf32>
    %cst_38 = arith.constant 1.000000e+00 : f32
    %167 = vector.broadcast %cst_38 : f32 to vector<8x32xf32>
    %168 = arith.addf %167, %166 : vector<8x32xf32>
    %169 = arith.divf %167, %168 : vector<8x32xf32>
    %170 = vector.extract_strided_slice %151 {offsets = [0, 64], sizes = [8, 32], strides = [1, 1]} : vector<8x96xf32> to vector<8x32xf32>
    %171 = vector.extract_strided_slice %153 {offsets = [0, 64], sizes = [8, 32], strides = [1, 1]} : vector<8x96xf32> to vector<8x32xf32>
    %172 = arith.addf %171, %12 : vector<8x32xf32>
    %173 = arith.mulf %161, %172 : vector<8x32xf32>
    %174 = arith.addf %170, %173 : vector<8x32xf32>
    %175 = math.tanh %174 : vector<8x32xf32>
    %cst_39 = arith.constant 1.000000e+00 : f32
    %176 = vector.broadcast %cst_39 : f32 to vector<8x32xf32>
    %177 = arith.subf %176, %169 : vector<8x32xf32>
    %178 = arith.mulf %177, %175 : vector<8x32xf32>
    %179 = arith.mulf %169, %146 : vector<8x32xf32>
    %180 = arith.addf %178, %179 : vector<8x32xf32>
    %c4 = arith.constant 4 : index
    %c0_40 = arith.constant 0 : index
    %c0_41 = arith.constant 0 : index
    %181 = vector.load %arg13[%c4, %c0_40, %c0_41] : memref<8x8x32xf32, #tpu.memory_space<vmem>>, vector<1x8x32xf32>
    %182 = vector.shape_cast %181 : vector<1x8x32xf32> to vector<8x32xf32>
    %183 = vector.shape_cast %180 : vector<8x32xf32> to vector<1x8x32xf32>
    tpu.vector_store %arg13[%c4, %c0_40, %c0_41], %183 {strides = array<i32>} : memref<8x8x32xf32, #tpu.memory_space<vmem>>, vector<1x8x32xf32>,
    %184 = vector.extract_strided_slice %8 {offsets = [5, 0, 0], sizes = [1, 8, 96], strides = [1, 1, 1]} : vector<8x8x96xf32> to vector<1x8x96xf32>
    %185 = vector.shape_cast %184 : vector<1x8x96xf32> to vector<8x96xf32>
    %186 = arith.truncf %180 : vector<8x32xf32> to vector<8x32xbf16>
    %cst_42 = arith.constant dense<0.000000e+00> : vector<8x96xf32>
    %187 = tpu.matmul %186, %9, %cst_42 {dimension_numbers = #tpu.dot_dimension_numbers<[1], [0], [0], [1], [0, 0, 1, 1], [], []>} : vector<8x32xbf16>, vector<32x96xbf16>, vector<8x96xf32> -> vector<8x96xf32>
    %188 = vector.extract_strided_slice %185 {offsets = [0, 0], sizes = [8, 32], strides = [1, 1]} : vector<8x96xf32> to vector<8x32xf32>
    %189 = vector.extract_strided_slice %187 {offsets = [0, 0], sizes = [8, 32], strides = [1, 1]} : vector<8x96xf32> to vector<8x32xf32>
    %190 = arith.addf %188, %189 : vector<8x32xf32>
    %191 = arith.negf %190 : vector<8x32xf32>
    %192 = math.exp %191 : vector<8x32xf32>
    %cst_43 = arith.constant 1.000000e+00 : f32
    %193 = vector.broadcast %cst_43 : f32 to vector<8x32xf32>
    %194 = arith.addf %193, %192 : vector<8x32xf32>
    %195 = arith.divf %193, %194 : vector<8x32xf32>
    %196 = vector.extract_strided_slice %185 {offsets = [0, 32], sizes = [8, 32], strides = [1, 1]} : vector<8x96xf32> to vector<8x32xf32>
    %197 = vector.extract_strided_slice %187 {offsets = [0, 32], sizes = [8, 32], strides = [1, 1]} : vector<8x96xf32> to vector<8x32xf32>
    %198 = arith.addf %196, %197 : vector<8x32xf32>
    %199 = arith.negf %198 : vector<8x32xf32>
    %200 = math.exp %199 : vector<8x32xf32>
    %cst_44 = arith.constant 1.000000e+00 : f32
    %201 = vector.broadcast %cst_44 : f32 to vector<8x32xf32>
    %202 = arith.addf %201, %200 : vector<8x32xf32>
    %203 = arith.divf %201, %202 : vector<8x32xf32>
    %204 = vector.extract_strided_slice %185 {offsets = [0, 64], sizes = [8, 32], strides = [1, 1]} : vector<8x96xf32> to vector<8x32xf32>
    %205 = vector.extract_strided_slice %187 {offsets = [0, 64], sizes = [8, 32], strides = [1, 1]} : vector<8x96xf32> to vector<8x32xf32>
    %206 = arith.addf %205, %12 : vector<8x32xf32>
    %207 = arith.mulf %195, %206 : vector<8x32xf32>
    %208 = arith.addf %204, %207 : vector<8x32xf32>
    %209 = math.tanh %208 : vector<8x32xf32>
    %cst_45 = arith.constant 1.000000e+00 : f32
    %210 = vector.broadcast %cst_45 : f32 to vector<8x32xf32>
    %211 = arith.subf %210, %203 : vector<8x32xf32>
    %212 = arith.mulf %211, %209 : vector<8x32xf32>
    %213 = arith.mulf %203, %180 : vector<8x32xf32>
    %214 = arith.addf %212, %213 : vector<8x32xf32>
    %c5 = arith.constant 5 : index
    %c0_46 = arith.constant 0 : index
    %c0_47 = arith.constant 0 : index
    %215 = vector.load %arg13[%c5, %c0_46, %c0_47] : memref<8x8x32xf32, #tpu.memory_space<vmem>>, vector<1x8x32xf32>
    %216 = vector.shape_cast %215 : vector<1x8x32xf32> to vector<8x32xf32>
    %217 = vector.shape_cast %214 : vector<8x32xf32> to vector<1x8x32xf32>
    tpu.vector_store %arg13[%c5, %c0_46, %c0_47], %217 {strides = array<i32>} : memref<8x8x32xf32, #tpu.memory_space<vmem>>, vector<1x8x32xf32>,
    %218 = vector.extract_strided_slice %8 {offsets = [6, 0, 0], sizes = [1, 8, 96], strides = [1, 1, 1]} : vector<8x8x96xf32> to vector<1x8x96xf32>
    %219 = vector.shape_cast %218 : vector<1x8x96xf32> to vector<8x96xf32>
    %220 = arith.truncf %214 : vector<8x32xf32> to vector<8x32xbf16>
    %cst_48 = arith.constant dense<0.000000e+00> : vector<8x96xf32>
    %221 = tpu.matmul %220, %9, %cst_48 {dimension_numbers = #tpu.dot_dimension_numbers<[1], [0], [0], [1], [0, 0, 1, 1], [], []>} : vector<8x32xbf16>, vector<32x96xbf16>, vector<8x96xf32> -> vector<8x96xf32>
    %222 = vector.extract_strided_slice %219 {offsets = [0, 0], sizes = [8, 32], strides = [1, 1]} : vector<8x96xf32> to vector<8x32xf32>
    %223 = vector.extract_strided_slice %221 {offsets = [0, 0], sizes = [8, 32], strides = [1, 1]} : vector<8x96xf32> to vector<8x32xf32>
    %224 = arith.addf %222, %223 : vector<8x32xf32>
    %225 = arith.negf %224 : vector<8x32xf32>
    %226 = math.exp %225 : vector<8x32xf32>
    %cst_49 = arith.constant 1.000000e+00 : f32
    %227 = vector.broadcast %cst_49 : f32 to vector<8x32xf32>
    %228 = arith.addf %227, %226 : vector<8x32xf32>
    %229 = arith.divf %227, %228 : vector<8x32xf32>
    %230 = vector.extract_strided_slice %219 {offsets = [0, 32], sizes = [8, 32], strides = [1, 1]} : vector<8x96xf32> to vector<8x32xf32>
    %231 = vector.extract_strided_slice %221 {offsets = [0, 32], sizes = [8, 32], strides = [1, 1]} : vector<8x96xf32> to vector<8x32xf32>
    %232 = arith.addf %230, %231 : vector<8x32xf32>
    %233 = arith.negf %232 : vector<8x32xf32>
    %234 = math.exp %233 : vector<8x32xf32>
    %cst_50 = arith.constant 1.000000e+00 : f32
    %235 = vector.broadcast %cst_50 : f32 to vector<8x32xf32>
    %236 = arith.addf %235, %234 : vector<8x32xf32>
    %237 = arith.divf %235, %236 : vector<8x32xf32>
    %238 = vector.extract_strided_slice %219 {offsets = [0, 64], sizes = [8, 32], strides = [1, 1]} : vector<8x96xf32> to vector<8x32xf32>
    %239 = vector.extract_strided_slice %221 {offsets = [0, 64], sizes = [8, 32], strides = [1, 1]} : vector<8x96xf32> to vector<8x32xf32>
    %240 = arith.addf %239, %12 : vector<8x32xf32>
    %241 = arith.mulf %229, %240 : vector<8x32xf32>
    %242 = arith.addf %238, %241 : vector<8x32xf32>
    %243 = math.tanh %242 : vector<8x32xf32>
    %cst_51 = arith.constant 1.000000e+00 : f32
    %244 = vector.broadcast %cst_51 : f32 to vector<8x32xf32>
    %245 = arith.subf %244, %237 : vector<8x32xf32>
    %246 = arith.mulf %245, %243 : vector<8x32xf32>
    %247 = arith.mulf %237, %214 : vector<8x32xf32>
    %248 = arith.addf %246, %247 : vector<8x32xf32>
    %c6 = arith.constant 6 : index
    %c0_52 = arith.constant 0 : index
    %c0_53 = arith.constant 0 : index
    %249 = vector.load %arg13[%c6, %c0_52, %c0_53] : memref<8x8x32xf32, #tpu.memory_space<vmem>>, vector<1x8x32xf32>
    %250 = vector.shape_cast %249 : vector<1x8x32xf32> to vector<8x32xf32>
    %251 = vector.shape_cast %248 : vector<8x32xf32> to vector<1x8x32xf32>
    tpu.vector_store %arg13[%c6, %c0_52, %c0_53], %251 {strides = array<i32>} : memref<8x8x32xf32, #tpu.memory_space<vmem>>, vector<1x8x32xf32>,
    %252 = vector.extract_strided_slice %8 {offsets = [7, 0, 0], sizes = [1, 8, 96], strides = [1, 1, 1]} : vector<8x8x96xf32> to vector<1x8x96xf32>
    %253 = vector.shape_cast %252 : vector<1x8x96xf32> to vector<8x96xf32>
    %254 = arith.truncf %248 : vector<8x32xf32> to vector<8x32xbf16>
    %cst_54 = arith.constant dense<0.000000e+00> : vector<8x96xf32>
    %255 = tpu.matmul %254, %9, %cst_54 {dimension_numbers = #tpu.dot_dimension_numbers<[1], [0], [0], [1], [0, 0, 1, 1], [], []>} : vector<8x32xbf16>, vector<32x96xbf16>, vector<8x96xf32> -> vector<8x96xf32>
    %256 = vector.extract_strided_slice %253 {offsets = [0, 0], sizes = [8, 32], strides = [1, 1]} : vector<8x96xf32> to vector<8x32xf32>
    %257 = vector.extract_strided_slice %255 {offsets = [0, 0], sizes = [8, 32], strides = [1, 1]} : vector<8x96xf32> to vector<8x32xf32>
    %258 = arith.addf %256, %257 : vector<8x32xf32>
    %259 = arith.negf %258 : vector<8x32xf32>
    %260 = math.exp %259 : vector<8x32xf32>
    %cst_55 = arith.constant 1.000000e+00 : f32
    %261 = vector.broadcast %cst_55 : f32 to vector<8x32xf32>
    %262 = arith.addf %261, %260 : vector<8x32xf32>
    %263 = arith.divf %261, %262 : vector<8x32xf32>
    %264 = vector.extract_strided_slice %253 {offsets = [0, 32], sizes = [8, 32], strides = [1, 1]} : vector<8x96xf32> to vector<8x32xf32>
    %265 = vector.extract_strided_slice %255 {offsets = [0, 32], sizes = [8, 32], strides = [1, 1]} : vector<8x96xf32> to vector<8x32xf32>
    %266 = arith.addf %264, %265 : vector<8x32xf32>
    %267 = arith.negf %266 : vector<8x32xf32>
    %268 = math.exp %267 : vector<8x32xf32>
    %cst_56 = arith.constant 1.000000e+00 : f32
    %269 = vector.broadcast %cst_56 : f32 to vector<8x32xf32>
    %270 = arith.addf %269, %268 : vector<8x32xf32>
    %271 = arith.divf %269, %270 : vector<8x32xf32>
    %272 = vector.extract_strided_slice %253 {offsets = [0, 64], sizes = [8, 32], strides = [1, 1]} : vector<8x96xf32> to vector<8x32xf32>
    %273 = vector.extract_strided_slice %255 {offsets = [0, 64], sizes = [8, 32], strides = [1, 1]} : vector<8x96xf32> to vector<8x32xf32>
    %274 = arith.addf %273, %12 : vector<8x32xf32>
    %275 = arith.mulf %263, %274 : vector<8x32xf32>
    %276 = arith.addf %272, %275 : vector<8x32xf32>
    %277 = math.tanh %276 : vector<8x32xf32>
    %cst_57 = arith.constant 1.000000e+00 : f32
    %278 = vector.broadcast %cst_57 : f32 to vector<8x32xf32>
    %279 = arith.subf %278, %271 : vector<8x32xf32>
    %280 = arith.mulf %279, %277 : vector<8x32xf32>
    %281 = arith.mulf %271, %248 : vector<8x32xf32>
    %282 = arith.addf %280, %281 : vector<8x32xf32>
    %c7 = arith.constant 7 : index
    %c0_58 = arith.constant 0 : index
    %c0_59 = arith.constant 0 : index
    %283 = vector.load %arg13[%c7, %c0_58, %c0_59] : memref<8x8x32xf32, #tpu.memory_space<vmem>>, vector<1x8x32xf32>
    %284 = vector.shape_cast %283 : vector<1x8x32xf32> to vector<8x32xf32>
    %285 = vector.shape_cast %282 : vector<8x32xf32> to vector<1x8x32xf32>
    tpu.vector_store %arg13[%c7, %c0_58, %c0_59], %285 {strides = array<i32>} : memref<8x8x32xf32, #tpu.memory_space<vmem>>, vector<1x8x32xf32>,
    %c0_60 = arith.constant 0 : index
    %c0_61 = arith.constant 0 : index
    %c0_62 = arith.constant 0 : index
    %286 = vector.load %arg13[%c0_60, %c0_61, %c0_62] : memref<8x8x32xf32, #tpu.memory_space<vmem>>, vector<8x8x32xf32>
    %287 = vector.shape_cast %286 : vector<8x8x32xf32> to vector<64x32xf32>
    %288 = arith.truncf %287 : vector<64x32xf32> to vector<64x32xbf16>
    %c0_63 = arith.constant 0 : index
    %c0_64 = arith.constant 0 : index
    %289 = vector.load %arg6[%c0_63, %c0_64] : memref<32x96xbf16, #tpu.memory_space<vmem>>, vector<32x96xbf16>
    %cst_65 = arith.constant dense<0.000000e+00> : vector<64x96xf32>
    %290 = tpu.matmul %288, %289, %cst_65 {dimension_numbers = #tpu.dot_dimension_numbers<[1], [0], [0], [1], [0, 0, 1, 1], [], []>} : vector<64x32xbf16>, vector<32x96xbf16>, vector<64x96xf32> -> vector<64x96xf32>
    %c0_66 = arith.constant 0 : index
    %c0_67 = arith.constant 0 : index
    %291 = vector.load %arg8[%c0_66, %c0_67] : memref<1x96xf32, #tpu.memory_space<vmem>>, vector<1x96xf32>
    %292 = vector.broadcast %291 : vector<1x96xf32> to vector<64x96xf32>
    %293 = arith.addf %290, %292 : vector<64x96xf32>
    %294 = vector.shape_cast %293 : vector<64x96xf32> to vector<8x8x96xf32>
    %c0_68 = arith.constant 0 : index
    %c0_69 = arith.constant 0 : index
    %295 = vector.load %arg7[%c0_68, %c0_69] : memref<32x96xbf16, #tpu.memory_space<vmem>>, vector<32x96xbf16>
    %c0_70 = arith.constant 0 : index
    %c0_71 = arith.constant 0 : index
    %296 = vector.load %arg9[%c0_70, %c0_71] : memref<1x32xf32, #tpu.memory_space<vmem>>, vector<1x32xf32>
    %297 = vector.shape_cast %296 : vector<1x32xf32> to vector<1x32xf32>
    %298 = vector.broadcast %297 : vector<1x32xf32> to vector<8x32xf32>
    %cst_72 = arith.constant 0.000000e+00 : f32
    %299 = vector.broadcast %cst_72 : f32 to vector<8x32xf32>
    %300 = vector.extract_strided_slice %294 {offsets = [0, 0, 0], sizes = [1, 8, 96], strides = [1, 1, 1]} : vector<8x8x96xf32> to vector<1x8x96xf32>
    %301 = vector.shape_cast %300 : vector<1x8x96xf32> to vector<8x96xf32>
    %302 = arith.truncf %299 : vector<8x32xf32> to vector<8x32xbf16>
    %cst_73 = arith.constant dense<0.000000e+00> : vector<8x96xf32>
    %303 = tpu.matmul %302, %295, %cst_73 {dimension_numbers = #tpu.dot_dimension_numbers<[1], [0], [0], [1], [0, 0, 1, 1], [], []>} : vector<8x32xbf16>, vector<32x96xbf16>, vector<8x96xf32> -> vector<8x96xf32>
    %304 = vector.extract_strided_slice %301 {offsets = [0, 0], sizes = [8, 32], strides = [1, 1]} : vector<8x96xf32> to vector<8x32xf32>
    %305 = vector.extract_strided_slice %303 {offsets = [0, 0], sizes = [8, 32], strides = [1, 1]} : vector<8x96xf32> to vector<8x32xf32>
    %306 = arith.addf %304, %305 : vector<8x32xf32>
    %307 = arith.negf %306 : vector<8x32xf32>
    %308 = math.exp %307 : vector<8x32xf32>
    %cst_74 = arith.constant 1.000000e+00 : f32
    %309 = vector.broadcast %cst_74 : f32 to vector<8x32xf32>
    %310 = arith.addf %309, %308 : vector<8x32xf32>
    %311 = arith.divf %309, %310 : vector<8x32xf32>
    %312 = vector.extract_strided_slice %301 {offsets = [0, 32], sizes = [8, 32], strides = [1, 1]} : vector<8x96xf32> to vector<8x32xf32>
    %313 = vector.extract_strided_slice %303 {offsets = [0, 32], sizes = [8, 32], strides = [1, 1]} : vector<8x96xf32> to vector<8x32xf32>
    %314 = arith.addf %312, %313 : vector<8x32xf32>
    %315 = arith.negf %314 : vector<8x32xf32>
    %316 = math.exp %315 : vector<8x32xf32>
    %cst_75 = arith.constant 1.000000e+00 : f32
    %317 = vector.broadcast %cst_75 : f32 to vector<8x32xf32>
    %318 = arith.addf %317, %316 : vector<8x32xf32>
    %319 = arith.divf %317, %318 : vector<8x32xf32>
    %320 = vector.extract_strided_slice %301 {offsets = [0, 64], sizes = [8, 32], strides = [1, 1]} : vector<8x96xf32> to vector<8x32xf32>
    %321 = vector.extract_strided_slice %303 {offsets = [0, 64], sizes = [8, 32], strides = [1, 1]} : vector<8x96xf32> to vector<8x32xf32>
    %322 = arith.addf %321, %298 : vector<8x32xf32>
    %323 = arith.mulf %311, %322 : vector<8x32xf32>
    %324 = arith.addf %320, %323 : vector<8x32xf32>
    %325 = math.tanh %324 : vector<8x32xf32>
    %cst_76 = arith.constant 1.000000e+00 : f32
    %326 = vector.broadcast %cst_76 : f32 to vector<8x32xf32>
    %327 = arith.subf %326, %319 : vector<8x32xf32>
    %328 = arith.mulf %327, %325 : vector<8x32xf32>
    %329 = arith.mulf %319, %299 : vector<8x32xf32>
    %330 = arith.addf %328, %329 : vector<8x32xf32>
    %331 = vector.extract_strided_slice %294 {offsets = [1, 0, 0], sizes = [1, 8, 96], strides = [1, 1, 1]} : vector<8x8x96xf32> to vector<1x8x96xf32>
    %332 = vector.shape_cast %331 : vector<1x8x96xf32> to vector<8x96xf32>
    %333 = arith.truncf %330 : vector<8x32xf32> to vector<8x32xbf16>
    %cst_77 = arith.constant dense<0.000000e+00> : vector<8x96xf32>
    %334 = tpu.matmul %333, %295, %cst_77 {dimension_numbers = #tpu.dot_dimension_numbers<[1], [0], [0], [1], [0, 0, 1, 1], [], []>} : vector<8x32xbf16>, vector<32x96xbf16>, vector<8x96xf32> -> vector<8x96xf32>
    %335 = vector.extract_strided_slice %332 {offsets = [0, 0], sizes = [8, 32], strides = [1, 1]} : vector<8x96xf32> to vector<8x32xf32>
    %336 = vector.extract_strided_slice %334 {offsets = [0, 0], sizes = [8, 32], strides = [1, 1]} : vector<8x96xf32> to vector<8x32xf32>
    %337 = arith.addf %335, %336 : vector<8x32xf32>
    %338 = arith.negf %337 : vector<8x32xf32>
    %339 = math.exp %338 : vector<8x32xf32>
    %cst_78 = arith.constant 1.000000e+00 : f32
    %340 = vector.broadcast %cst_78 : f32 to vector<8x32xf32>
    %341 = arith.addf %340, %339 : vector<8x32xf32>
    %342 = arith.divf %340, %341 : vector<8x32xf32>
    %343 = vector.extract_strided_slice %332 {offsets = [0, 32], sizes = [8, 32], strides = [1, 1]} : vector<8x96xf32> to vector<8x32xf32>
    %344 = vector.extract_strided_slice %334 {offsets = [0, 32], sizes = [8, 32], strides = [1, 1]} : vector<8x96xf32> to vector<8x32xf32>
    %345 = arith.addf %343, %344 : vector<8x32xf32>
    %346 = arith.negf %345 : vector<8x32xf32>
    %347 = math.exp %346 : vector<8x32xf32>
    %cst_79 = arith.constant 1.000000e+00 : f32
    %348 = vector.broadcast %cst_79 : f32 to vector<8x32xf32>
    %349 = arith.addf %348, %347 : vector<8x32xf32>
    %350 = arith.divf %348, %349 : vector<8x32xf32>
    %351 = vector.extract_strided_slice %332 {offsets = [0, 64], sizes = [8, 32], strides = [1, 1]} : vector<8x96xf32> to vector<8x32xf32>
    %352 = vector.extract_strided_slice %334 {offsets = [0, 64], sizes = [8, 32], strides = [1, 1]} : vector<8x96xf32> to vector<8x32xf32>
    %353 = arith.addf %352, %298 : vector<8x32xf32>
    %354 = arith.mulf %342, %353 : vector<8x32xf32>
    %355 = arith.addf %351, %354 : vector<8x32xf32>
    %356 = math.tanh %355 : vector<8x32xf32>
    %cst_80 = arith.constant 1.000000e+00 : f32
    %357 = vector.broadcast %cst_80 : f32 to vector<8x32xf32>
    %358 = arith.subf %357, %350 : vector<8x32xf32>
    %359 = arith.mulf %358, %356 : vector<8x32xf32>
    %360 = arith.mulf %350, %330 : vector<8x32xf32>
    %361 = arith.addf %359, %360 : vector<8x32xf32>
    %362 = vector.extract_strided_slice %294 {offsets = [2, 0, 0], sizes = [1, 8, 96], strides = [1, 1, 1]} : vector<8x8x96xf32> to vector<1x8x96xf32>
    %363 = vector.shape_cast %362 : vector<1x8x96xf32> to vector<8x96xf32>
    %364 = arith.truncf %361 : vector<8x32xf32> to vector<8x32xbf16>
    %cst_81 = arith.constant dense<0.000000e+00> : vector<8x96xf32>
    %365 = tpu.matmul %364, %295, %cst_81 {dimension_numbers = #tpu.dot_dimension_numbers<[1], [0], [0], [1], [0, 0, 1, 1], [], []>} : vector<8x32xbf16>, vector<32x96xbf16>, vector<8x96xf32> -> vector<8x96xf32>
    %366 = vector.extract_strided_slice %363 {offsets = [0, 0], sizes = [8, 32], strides = [1, 1]} : vector<8x96xf32> to vector<8x32xf32>
    %367 = vector.extract_strided_slice %365 {offsets = [0, 0], sizes = [8, 32], strides = [1, 1]} : vector<8x96xf32> to vector<8x32xf32>
    %368 = arith.addf %366, %367 : vector<8x32xf32>
    %369 = arith.negf %368 : vector<8x32xf32>
    %370 = math.exp %369 : vector<8x32xf32>
    %cst_82 = arith.constant 1.000000e+00 : f32
    %371 = vector.broadcast %cst_82 : f32 to vector<8x32xf32>
    %372 = arith.addf %371, %370 : vector<8x32xf32>
    %373 = arith.divf %371, %372 : vector<8x32xf32>
    %374 = vector.extract_strided_slice %363 {offsets = [0, 32], sizes = [8, 32], strides = [1, 1]} : vector<8x96xf32> to vector<8x32xf32>
    %375 = vector.extract_strided_slice %365 {offsets = [0, 32], sizes = [8, 32], strides = [1, 1]} : vector<8x96xf32> to vector<8x32xf32>
    %376 = arith.addf %374, %375 : vector<8x32xf32>
    %377 = arith.negf %376 : vector<8x32xf32>
    %378 = math.exp %377 : vector<8x32xf32>
    %cst_83 = arith.constant 1.000000e+00 : f32
    %379 = vector.broadcast %cst_83 : f32 to vector<8x32xf32>
    %380 = arith.addf %379, %378 : vector<8x32xf32>
    %381 = arith.divf %379, %380 : vector<8x32xf32>
    %382 = vector.extract_strided_slice %363 {offsets = [0, 64], sizes = [8, 32], strides = [1, 1]} : vector<8x96xf32> to vector<8x32xf32>
    %383 = vector.extract_strided_slice %365 {offsets = [0, 64], sizes = [8, 32], strides = [1, 1]} : vector<8x96xf32> to vector<8x32xf32>
    %384 = arith.addf %383, %298 : vector<8x32xf32>
    %385 = arith.mulf %373, %384 : vector<8x32xf32>
    %386 = arith.addf %382, %385 : vector<8x32xf32>
    %387 = math.tanh %386 : vector<8x32xf32>
    %cst_84 = arith.constant 1.000000e+00 : f32
    %388 = vector.broadcast %cst_84 : f32 to vector<8x32xf32>
    %389 = arith.subf %388, %381 : vector<8x32xf32>
    %390 = arith.mulf %389, %387 : vector<8x32xf32>
    %391 = arith.mulf %381, %361 : vector<8x32xf32>
    %392 = arith.addf %390, %391 : vector<8x32xf32>
    %393 = vector.extract_strided_slice %294 {offsets = [3, 0, 0], sizes = [1, 8, 96], strides = [1, 1, 1]} : vector<8x8x96xf32> to vector<1x8x96xf32>
    %394 = vector.shape_cast %393 : vector<1x8x96xf32> to vector<8x96xf32>
    %395 = arith.truncf %392 : vector<8x32xf32> to vector<8x32xbf16>
    %cst_85 = arith.constant dense<0.000000e+00> : vector<8x96xf32>
    %396 = tpu.matmul %395, %295, %cst_85 {dimension_numbers = #tpu.dot_dimension_numbers<[1], [0], [0], [1], [0, 0, 1, 1], [], []>} : vector<8x32xbf16>, vector<32x96xbf16>, vector<8x96xf32> -> vector<8x96xf32>
    %397 = vector.extract_strided_slice %394 {offsets = [0, 0], sizes = [8, 32], strides = [1, 1]} : vector<8x96xf32> to vector<8x32xf32>
    %398 = vector.extract_strided_slice %396 {offsets = [0, 0], sizes = [8, 32], strides = [1, 1]} : vector<8x96xf32> to vector<8x32xf32>
    %399 = arith.addf %397, %398 : vector<8x32xf32>
    %400 = arith.negf %399 : vector<8x32xf32>
    %401 = math.exp %400 : vector<8x32xf32>
    %cst_86 = arith.constant 1.000000e+00 : f32
    %402 = vector.broadcast %cst_86 : f32 to vector<8x32xf32>
    %403 = arith.addf %402, %401 : vector<8x32xf32>
    %404 = arith.divf %402, %403 : vector<8x32xf32>
    %405 = vector.extract_strided_slice %394 {offsets = [0, 32], sizes = [8, 32], strides = [1, 1]} : vector<8x96xf32> to vector<8x32xf32>
    %406 = vector.extract_strided_slice %396 {offsets = [0, 32], sizes = [8, 32], strides = [1, 1]} : vector<8x96xf32> to vector<8x32xf32>
    %407 = arith.addf %405, %406 : vector<8x32xf32>
    %408 = arith.negf %407 : vector<8x32xf32>
    %409 = math.exp %408 : vector<8x32xf32>
    %cst_87 = arith.constant 1.000000e+00 : f32
    %410 = vector.broadcast %cst_87 : f32 to vector<8x32xf32>
    %411 = arith.addf %410, %409 : vector<8x32xf32>
    %412 = arith.divf %410, %411 : vector<8x32xf32>
    %413 = vector.extract_strided_slice %394 {offsets = [0, 64], sizes = [8, 32], strides = [1, 1]} : vector<8x96xf32> to vector<8x32xf32>
    %414 = vector.extract_strided_slice %396 {offsets = [0, 64], sizes = [8, 32], strides = [1, 1]} : vector<8x96xf32> to vector<8x32xf32>
    %415 = arith.addf %414, %298 : vector<8x32xf32>
    %416 = arith.mulf %404, %415 : vector<8x32xf32>
    %417 = arith.addf %413, %416 : vector<8x32xf32>
    %418 = math.tanh %417 : vector<8x32xf32>
    %cst_88 = arith.constant 1.000000e+00 : f32
    %419 = vector.broadcast %cst_88 : f32 to vector<8x32xf32>
    %420 = arith.subf %419, %412 : vector<8x32xf32>
    %421 = arith.mulf %420, %418 : vector<8x32xf32>
    %422 = arith.mulf %412, %392 : vector<8x32xf32>
    %423 = arith.addf %421, %422 : vector<8x32xf32>
    %424 = vector.extract_strided_slice %294 {offsets = [4, 0, 0], sizes = [1, 8, 96], strides = [1, 1, 1]} : vector<8x8x96xf32> to vector<1x8x96xf32>
    %425 = vector.shape_cast %424 : vector<1x8x96xf32> to vector<8x96xf32>
    %426 = arith.truncf %423 : vector<8x32xf32> to vector<8x32xbf16>
    %cst_89 = arith.constant dense<0.000000e+00> : vector<8x96xf32>
    %427 = tpu.matmul %426, %295, %cst_89 {dimension_numbers = #tpu.dot_dimension_numbers<[1], [0], [0], [1], [0, 0, 1, 1], [], []>} : vector<8x32xbf16>, vector<32x96xbf16>, vector<8x96xf32> -> vector<8x96xf32>
    %428 = vector.extract_strided_slice %425 {offsets = [0, 0], sizes = [8, 32], strides = [1, 1]} : vector<8x96xf32> to vector<8x32xf32>
    %429 = vector.extract_strided_slice %427 {offsets = [0, 0], sizes = [8, 32], strides = [1, 1]} : vector<8x96xf32> to vector<8x32xf32>
    %430 = arith.addf %428, %429 : vector<8x32xf32>
    %431 = arith.negf %430 : vector<8x32xf32>
    %432 = math.exp %431 : vector<8x32xf32>
    %cst_90 = arith.constant 1.000000e+00 : f32
    %433 = vector.broadcast %cst_90 : f32 to vector<8x32xf32>
    %434 = arith.addf %433, %432 : vector<8x32xf32>
    %435 = arith.divf %433, %434 : vector<8x32xf32>
    %436 = vector.extract_strided_slice %425 {offsets = [0, 32], sizes = [8, 32], strides = [1, 1]} : vector<8x96xf32> to vector<8x32xf32>
    %437 = vector.extract_strided_slice %427 {offsets = [0, 32], sizes = [8, 32], strides = [1, 1]} : vector<8x96xf32> to vector<8x32xf32>
    %438 = arith.addf %436, %437 : vector<8x32xf32>
    %439 = arith.negf %438 : vector<8x32xf32>
    %440 = math.exp %439 : vector<8x32xf32>
    %cst_91 = arith.constant 1.000000e+00 : f32
    %441 = vector.broadcast %cst_91 : f32 to vector<8x32xf32>
    %442 = arith.addf %441, %440 : vector<8x32xf32>
    %443 = arith.divf %441, %442 : vector<8x32xf32>
    %444 = vector.extract_strided_slice %425 {offsets = [0, 64], sizes = [8, 32], strides = [1, 1]} : vector<8x96xf32> to vector<8x32xf32>
    %445 = vector.extract_strided_slice %427 {offsets = [0, 64], sizes = [8, 32], strides = [1, 1]} : vector<8x96xf32> to vector<8x32xf32>
    %446 = arith.addf %445, %298 : vector<8x32xf32>
    %447 = arith.mulf %435, %446 : vector<8x32xf32>
    %448 = arith.addf %444, %447 : vector<8x32xf32>
    %449 = math.tanh %448 : vector<8x32xf32>
    %cst_92 = arith.constant 1.000000e+00 : f32
    %450 = vector.broadcast %cst_92 : f32 to vector<8x32xf32>
    %451 = arith.subf %450, %443 : vector<8x32xf32>
    %452 = arith.mulf %451, %449 : vector<8x32xf32>
    %453 = arith.mulf %443, %423 : vector<8x32xf32>
    %454 = arith.addf %452, %453 : vector<8x32xf32>
    %455 = vector.extract_strided_slice %294 {offsets = [5, 0, 0], sizes = [1, 8, 96], strides = [1, 1, 1]} : vector<8x8x96xf32> to vector<1x8x96xf32>
    %456 = vector.shape_cast %455 : vector<1x8x96xf32> to vector<8x96xf32>
    %457 = arith.truncf %454 : vector<8x32xf32> to vector<8x32xbf16>
    %cst_93 = arith.constant dense<0.000000e+00> : vector<8x96xf32>
    %458 = tpu.matmul %457, %295, %cst_93 {dimension_numbers = #tpu.dot_dimension_numbers<[1], [0], [0], [1], [0, 0, 1, 1], [], []>} : vector<8x32xbf16>, vector<32x96xbf16>, vector<8x96xf32> -> vector<8x96xf32>
    %459 = vector.extract_strided_slice %456 {offsets = [0, 0], sizes = [8, 32], strides = [1, 1]} : vector<8x96xf32> to vector<8x32xf32>
    %460 = vector.extract_strided_slice %458 {offsets = [0, 0], sizes = [8, 32], strides = [1, 1]} : vector<8x96xf32> to vector<8x32xf32>
    %461 = arith.addf %459, %460 : vector<8x32xf32>
    %462 = arith.negf %461 : vector<8x32xf32>
    %463 = math.exp %462 : vector<8x32xf32>
    %cst_94 = arith.constant 1.000000e+00 : f32
    %464 = vector.broadcast %cst_94 : f32 to vector<8x32xf32>
    %465 = arith.addf %464, %463 : vector<8x32xf32>
    %466 = arith.divf %464, %465 : vector<8x32xf32>
    %467 = vector.extract_strided_slice %456 {offsets = [0, 32], sizes = [8, 32], strides = [1, 1]} : vector<8x96xf32> to vector<8x32xf32>
    %468 = vector.extract_strided_slice %458 {offsets = [0, 32], sizes = [8, 32], strides = [1, 1]} : vector<8x96xf32> to vector<8x32xf32>
    %469 = arith.addf %467, %468 : vector<8x32xf32>
    %470 = arith.negf %469 : vector<8x32xf32>
    %471 = math.exp %470 : vector<8x32xf32>
    %cst_95 = arith.constant 1.000000e+00 : f32
    %472 = vector.broadcast %cst_95 : f32 to vector<8x32xf32>
    %473 = arith.addf %472, %471 : vector<8x32xf32>
    %474 = arith.divf %472, %473 : vector<8x32xf32>
    %475 = vector.extract_strided_slice %456 {offsets = [0, 64], sizes = [8, 32], strides = [1, 1]} : vector<8x96xf32> to vector<8x32xf32>
    %476 = vector.extract_strided_slice %458 {offsets = [0, 64], sizes = [8, 32], strides = [1, 1]} : vector<8x96xf32> to vector<8x32xf32>
    %477 = arith.addf %476, %298 : vector<8x32xf32>
    %478 = arith.mulf %466, %477 : vector<8x32xf32>
    %479 = arith.addf %475, %478 : vector<8x32xf32>
    %480 = math.tanh %479 : vector<8x32xf32>
    %cst_96 = arith.constant 1.000000e+00 : f32
    %481 = vector.broadcast %cst_96 : f32 to vector<8x32xf32>
    %482 = arith.subf %481, %474 : vector<8x32xf32>
    %483 = arith.mulf %482, %480 : vector<8x32xf32>
    %484 = arith.mulf %474, %454 : vector<8x32xf32>
    %485 = arith.addf %483, %484 : vector<8x32xf32>
    %486 = vector.extract_strided_slice %294 {offsets = [6, 0, 0], sizes = [1, 8, 96], strides = [1, 1, 1]} : vector<8x8x96xf32> to vector<1x8x96xf32>
    %487 = vector.shape_cast %486 : vector<1x8x96xf32> to vector<8x96xf32>
    %488 = arith.truncf %485 : vector<8x32xf32> to vector<8x32xbf16>
    %cst_97 = arith.constant dense<0.000000e+00> : vector<8x96xf32>
    %489 = tpu.matmul %488, %295, %cst_97 {dimension_numbers = #tpu.dot_dimension_numbers<[1], [0], [0], [1], [0, 0, 1, 1], [], []>} : vector<8x32xbf16>, vector<32x96xbf16>, vector<8x96xf32> -> vector<8x96xf32>
    %490 = vector.extract_strided_slice %487 {offsets = [0, 0], sizes = [8, 32], strides = [1, 1]} : vector<8x96xf32> to vector<8x32xf32>
    %491 = vector.extract_strided_slice %489 {offsets = [0, 0], sizes = [8, 32], strides = [1, 1]} : vector<8x96xf32> to vector<8x32xf32>
    %492 = arith.addf %490, %491 : vector<8x32xf32>
    %493 = arith.negf %492 : vector<8x32xf32>
    %494 = math.exp %493 : vector<8x32xf32>
    %cst_98 = arith.constant 1.000000e+00 : f32
    %495 = vector.broadcast %cst_98 : f32 to vector<8x32xf32>
    %496 = arith.addf %495, %494 : vector<8x32xf32>
    %497 = arith.divf %495, %496 : vector<8x32xf32>
    %498 = vector.extract_strided_slice %487 {offsets = [0, 32], sizes = [8, 32], strides = [1, 1]} : vector<8x96xf32> to vector<8x32xf32>
    %499 = vector.extract_strided_slice %489 {offsets = [0, 32], sizes = [8, 32], strides = [1, 1]} : vector<8x96xf32> to vector<8x32xf32>
    %500 = arith.addf %498, %499 : vector<8x32xf32>
    %501 = arith.negf %500 : vector<8x32xf32>
    %502 = math.exp %501 : vector<8x32xf32>
    %cst_99 = arith.constant 1.000000e+00 : f32
    %503 = vector.broadcast %cst_99 : f32 to vector<8x32xf32>
    %504 = arith.addf %503, %502 : vector<8x32xf32>
    %505 = arith.divf %503, %504 : vector<8x32xf32>
    %506 = vector.extract_strided_slice %487 {offsets = [0, 64], sizes = [8, 32], strides = [1, 1]} : vector<8x96xf32> to vector<8x32xf32>
    %507 = vector.extract_strided_slice %489 {offsets = [0, 64], sizes = [8, 32], strides = [1, 1]} : vector<8x96xf32> to vector<8x32xf32>
    %508 = arith.addf %507, %298 : vector<8x32xf32>
    %509 = arith.mulf %497, %508 : vector<8x32xf32>
    %510 = arith.addf %506, %509 : vector<8x32xf32>
    %511 = math.tanh %510 : vector<8x32xf32>
    %cst_100 = arith.constant 1.000000e+00 : f32
    %512 = vector.broadcast %cst_100 : f32 to vector<8x32xf32>
    %513 = arith.subf %512, %505 : vector<8x32xf32>
    %514 = arith.mulf %513, %511 : vector<8x32xf32>
    %515 = arith.mulf %505, %485 : vector<8x32xf32>
    %516 = arith.addf %514, %515 : vector<8x32xf32>
    %517 = vector.extract_strided_slice %294 {offsets = [7, 0, 0], sizes = [1, 8, 96], strides = [1, 1, 1]} : vector<8x8x96xf32> to vector<1x8x96xf32>
    %518 = vector.shape_cast %517 : vector<1x8x96xf32> to vector<8x96xf32>
    %519 = arith.truncf %516 : vector<8x32xf32> to vector<8x32xbf16>
    %cst_101 = arith.constant dense<0.000000e+00> : vector<8x96xf32>
    %520 = tpu.matmul %519, %295, %cst_101 {dimension_numbers = #tpu.dot_dimension_numbers<[1], [0], [0], [1], [0, 0, 1, 1], [], []>} : vector<8x32xbf16>, vector<32x96xbf16>, vector<8x96xf32> -> vector<8x96xf32>
    %521 = vector.extract_strided_slice %518 {offsets = [0, 0], sizes = [8, 32], strides = [1, 1]} : vector<8x96xf32> to vector<8x32xf32>
    %522 = vector.extract_strided_slice %520 {offsets = [0, 0], sizes = [8, 32], strides = [1, 1]} : vector<8x96xf32> to vector<8x32xf32>
    %523 = arith.addf %521, %522 : vector<8x32xf32>
    %524 = arith.negf %523 : vector<8x32xf32>
    %525 = math.exp %524 : vector<8x32xf32>
    %cst_102 = arith.constant 1.000000e+00 : f32
    %526 = vector.broadcast %cst_102 : f32 to vector<8x32xf32>
    %527 = arith.addf %526, %525 : vector<8x32xf32>
    %528 = arith.divf %526, %527 : vector<8x32xf32>
    %529 = vector.extract_strided_slice %518 {offsets = [0, 32], sizes = [8, 32], strides = [1, 1]} : vector<8x96xf32> to vector<8x32xf32>
    %530 = vector.extract_strided_slice %520 {offsets = [0, 32], sizes = [8, 32], strides = [1, 1]} : vector<8x96xf32> to vector<8x32xf32>
    %531 = arith.addf %529, %530 : vector<8x32xf32>
    %532 = arith.negf %531 : vector<8x32xf32>
    %533 = math.exp %532 : vector<8x32xf32>
    %cst_103 = arith.constant 1.000000e+00 : f32
    %534 = vector.broadcast %cst_103 : f32 to vector<8x32xf32>
    %535 = arith.addf %534, %533 : vector<8x32xf32>
    %536 = arith.divf %534, %535 : vector<8x32xf32>
    %537 = vector.extract_strided_slice %518 {offsets = [0, 64], sizes = [8, 32], strides = [1, 1]} : vector<8x96xf32> to vector<8x32xf32>
    %538 = vector.extract_strided_slice %520 {offsets = [0, 64], sizes = [8, 32], strides = [1, 1]} : vector<8x96xf32> to vector<8x32xf32>
    %539 = arith.addf %538, %298 : vector<8x32xf32>
    %540 = arith.mulf %528, %539 : vector<8x32xf32>
    %541 = arith.addf %537, %540 : vector<8x32xf32>
    %542 = math.tanh %541 : vector<8x32xf32>
    %cst_104 = arith.constant 1.000000e+00 : f32
    %543 = vector.broadcast %cst_104 : f32 to vector<8x32xf32>
    %544 = arith.subf %543, %536 : vector<8x32xf32>
    %545 = arith.mulf %544, %542 : vector<8x32xf32>
    %546 = arith.mulf %536, %516 : vector<8x32xf32>
    %547 = arith.addf %545, %546 : vector<8x32xf32>
    %548 = arith.truncf %547 : vector<8x32xf32> to vector<8x32xbf16>
    %c0_105 = arith.constant 0 : index
    %c0_106 = arith.constant 0 : index
    %549 = vector.load %arg10[%c0_105, %c0_106] : memref<32x128xbf16, #tpu.memory_space<vmem>>, vector<32x128xbf16>
    %cst_107 = arith.constant dense<0.000000e+00> : vector<8x128xf32>
    %550 = tpu.matmul %548, %549, %cst_107 {dimension_numbers = #tpu.dot_dimension_numbers<[1], [0], [0], [1], [0, 0, 1, 1], [], []>} : vector<8x32xbf16>, vector<32x128xbf16>, vector<8x128xf32> -> vector<8x128xf32>
    %c0_108 = arith.constant 0 : index
    %c0_109 = arith.constant 0 : index
    %551 = vector.load %arg11[%c0_108, %c0_109] : memref<1x128xf32, #tpu.memory_space<vmem>>, vector<1x128xf32>
    %552 = vector.broadcast %551 : vector<1x128xf32> to vector<8x128xf32>
    %553 = arith.addf %550, %552 : vector<8x128xf32>
    %c0_110 = arith.constant 0 : index
    %c0_111 = arith.constant 0 : index
    %554 = vector.load %arg12[%c0_110, %c0_111] : memref<8x128xf32, #tpu.memory_space<vmem>>, vector<8x128xf32>
    tpu.vector_store %arg12[%c0_110, %c0_111], %553 {strides = array<i32>} : memref<8x128xf32, #tpu.memory_space<vmem>>, vector<8x128xf32>,
    return
  }
  func.func @transform_0(%arg0: i32) -> (i32, i32, i32) {
    %c0_i32 = arith.constant 0 : i32
    %c0_i32_0 = arith.constant 0 : i32
    %c0_i32_1 = arith.constant 0 : i32
    return %c0_i32, %arg0, %c0_i32_0 : i32, i32, i32
  }
  func.func @transform_1(%arg0: i32) -> (i32, i32) {
    %c0_i32 = arith.constant 0 : i32
    %c0_i32_0 = arith.constant 0 : i32
    %c0_i32_1 = arith.constant 0 : i32
    return %c0_i32, %c0_i32_0 : i32, i32
  }
  func.func @transform_2(%arg0: i32) -> (i32, i32) {
    %c0_i32 = arith.constant 0 : i32
    %c0_i32_0 = arith.constant 0 : i32
    %c0_i32_1 = arith.constant 0 : i32
    return %c0_i32, %c0_i32_0 : i32, i32
  }
  func.func @transform_3(%arg0: i32) -> (i32, i32) {
    %c0_i32 = arith.constant 0 : i32
    %c0_i32_0 = arith.constant 0 : i32
    %c0_i32_1 = arith.constant 0 : i32
    return %c0_i32, %c0_i32_0 : i32, i32
  }
  func.func @transform_4(%arg0: i32) -> (i32, i32) {
    %c0_i32 = arith.constant 0 : i32
    %c0_i32_0 = arith.constant 0 : i32
    %c0_i32_1 = arith.constant 0 : i32
    return %c0_i32, %c0_i32_0 : i32, i32
  }
  func.func @transform_5(%arg0: i32) -> (i32, i32) {
    %c0_i32 = arith.constant 0 : i32
    %c0_i32_0 = arith.constant 0 : i32
    %c0_i32_1 = arith.constant 0 : i32
    return %c0_i32, %c0_i32_0 : i32, i32
  }
  func.func @transform_6(%arg0: i32) -> (i32, i32) {
    %c0_i32 = arith.constant 0 : i32
    %c0_i32_0 = arith.constant 0 : i32
    %c0_i32_1 = arith.constant 0 : i32
    return %c0_i32, %c0_i32_0 : i32, i32
  }
  func.func @transform_7(%arg0: i32) -> (i32, i32) {
    %c0_i32 = arith.constant 0 : i32
    %c0_i32_0 = arith.constant 0 : i32
    %c0_i32_1 = arith.constant 0 : i32
    return %c0_i32, %c0_i32_0 : i32, i32
  }
  func.func @transform_8(%arg0: i32) -> (i32, i32) {
    %c0_i32 = arith.constant 0 : i32
    %c0_i32_0 = arith.constant 0 : i32
    %c0_i32_1 = arith.constant 0 : i32
    return %c0_i32, %c0_i32_0 : i32, i32
  }
  func.func @transform_9(%arg0: i32) -> (i32, i32) {
    %c0_i32 = arith.constant 0 : i32
    %c0_i32_0 = arith.constant 0 : i32
    %c0_i32_1 = arith.constant 0 : i32
    return %c0_i32, %c0_i32_0 : i32, i32
  }
  func.func @transform_10(%arg0: i32) -> (i32, i32) {
    %c0_i32 = arith.constant 0 : i32
    %c0_i32_0 = arith.constant 0 : i32
    %c0_i32_1 = arith.constant 0 : i32
    return %c0_i32, %c0_i32_0 : i32, i32
  }
  func.func @transform_11(%arg0: i32) -> (i32, i32) {
    %c0_i32 = arith.constant 0 : i32
    %c0_i32_0 = arith.constant 0 : i32
    return %arg0, %c0_i32 : i32, i32
  }
}

</mosaic_0001>

<llo_original>
// kernel: tpu_custom_call.1
$region0: #{tpu_custom_call.1}
  #allocation0 [shape = 'u32[]', space=smem, size = 0x4, offset = 0x4, fixed_abs, tag = 'smem constant byte address 0x4 - core index']
  #allocation1 [shape = 'u32[144,128]{1,0:T(1,128)}', space=vmem, size = 0x12000, scoped, tag = 'internal scratch']
  #allocation2 [shape = 'f32[8,8,32]{2,1,0:T(8,128)}', space=vmem, size = 0x8000, scoped, tag = 'scratch operand']
  %s0 = inlined_call_operand.vmem [shape: f32[8,8,4], index: 0, kind: input, shape index: {}]
  %s1 = inlined_call_operand.vmem [shape: bf16[4,96], index: 1, kind: input, shape index: {}]
  %s2 = inlined_call_operand.vmem [shape: bf16[32,96], index: 2, kind: input, shape index: {}]
  %s3 = inlined_call_operand.vmem [shape: f32[1,96], index: 3, kind: input, shape index: {}]
  %s4 = inlined_call_operand.vmem [shape: f32[1,32], index: 4, kind: input, shape index: {}]
  %s5 = inlined_call_operand.vmem [shape: bf16[32,96], index: 5, kind: input, shape index: {}]
  %s6 = inlined_call_operand.vmem [shape: bf16[32,96], index: 6, kind: input, shape index: {}]
  %s7 = inlined_call_operand.vmem [shape: f32[1,96], index: 7, kind: input, shape index: {}]
  %s8 = inlined_call_operand.vmem [shape: f32[1,32], index: 8, kind: input, shape index: {}]
  %s9 = inlined_call_operand.vmem [shape: bf16[32,128], index: 9, kind: input, shape index: {}]
  %s10 = inlined_call_operand.vmem [shape: f32[1,128], index: 10, kind: input, shape index: {}]
  %s11 = inlined_call_operand.hbm [shape: f32[8,128], index: 11, kind: output, shape index: {}]
  %s12 = sld [smem:[#allocation0]]
  $region54: #{tpu_custom_call.1} parent=0
    _
  %s14 = ssub.s32 1, %s12
  %s15 = scalar_select 0, %s14, %s12
  $region1: #{tpu_custom_call.1} parent=0
    #allocation3 [shape = 'u8[4096]{0}', space=vmem, size = 0x1000, scoped, tag = 'output window, operand 0, single buffered']
    #allocation4 [shape = 's32[1]{0}', space=sflag, size = 0x4, scoped, tag = 'scoped memory for tpu_custom_call.1']
    %16 = vsyncpa [#allocation4], 0
    // Predicated region
    $region2: #{tpu_custom_call.1} parent=1 // pred_check
      _
    $region3: #{tpu_custom_call.1} parent=1 // pred_check_branch
      %18 = sbr.rel (0) target = $region5
    $region4: #{tpu_custom_call.1} parent=1 // pred_region
      _
    $region5: #{tpu_custom_call.1} parent=1 // pred_fallthru
      _
    // Predicated region
    $region6: #{tpu_custom_call.1} parent=1 // pred_check
      _
    $region7: #{tpu_custom_call.1} parent=1 // pred_check_branch
      %20 = sbr.rel (0) target = $region9
    $region8: #{tpu_custom_call.1} parent=1 // pred_region
      _
    $region9: #{tpu_custom_call.1} parent=1 // pred_fallthru
      _
    // Predicated region
    $region10: #{tpu_custom_call.1} parent=1 // pred_check
      _
    $region11: #{tpu_custom_call.1} parent=1 // pred_check_branch
      %22 = sbr.rel (0) target = $region13
    $region12: #{tpu_custom_call.1} parent=1 // pred_region
      _
    $region13: #{tpu_custom_call.1} parent=1 // pred_fallthru
      _
    // Predicated region
    $region14: #{tpu_custom_call.1} parent=1 // pred_check
      _
    $region15: #{tpu_custom_call.1} parent=1 // pred_check_branch
      %24 = sbr.rel (0) target = $region17
    $region16: #{tpu_custom_call.1} parent=1 // pred_region
      _
    $region17: #{tpu_custom_call.1} parent=1 // pred_fallthru
      _
    // Predicated region
    $region18: #{tpu_custom_call.1} parent=1 // pred_check
      _
    $region19: #{tpu_custom_call.1} parent=1 // pred_check_branch
      %26 = sbr.rel (0) target = $region21
    $region20: #{tpu_custom_call.1} parent=1 // pred_region
      _
    $region21: #{tpu_custom_call.1} parent=1 // pred_fallthru
      _
    // Predicated region
    $region22: #{tpu_custom_call.1} parent=1 // pred_check
      _
    $region23: #{tpu_custom_call.1} parent=1 // pred_check_branch
      %28 = sbr.rel (0) target = $region25
    $region24: #{tpu_custom_call.1} parent=1 // pred_region
      _
    $region25: #{tpu_custom_call.1} parent=1 // pred_fallthru
      _
    // Predicated region
    $region26: #{tpu_custom_call.1} parent=1 // pred_check
      _
    $region27: #{tpu_custom_call.1} parent=1 // pred_check_branch
      %30 = sbr.rel (0) target = $region29
    $region28: #{tpu_custom_call.1} parent=1 // pred_region
      _
    $region29: #{tpu_custom_call.1} parent=1 // pred_fallthru
      _
    // Predicated region
    $region30: #{tpu_custom_call.1} parent=1 // pred_check
      _
    $region31: #{tpu_custom_call.1} parent=1 // pred_check_branch
      %32 = sbr.rel (0) target = $region33
    $region32: #{tpu_custom_call.1} parent=1 // pred_region
      _
    $region33: #{tpu_custom_call.1} parent=1 // pred_fallthru
      _
    // Predicated region
    $region34: #{tpu_custom_call.1} parent=1 // pred_check
      _
    $region35: #{tpu_custom_call.1} parent=1 // pred_check_branch
      %34 = sbr.rel (0) target = $region37
    $region36: #{tpu_custom_call.1} parent=1 // pred_region
      _
    $region37: #{tpu_custom_call.1} parent=1 // pred_fallthru
      _
    // Predicated region
    $region38: #{tpu_custom_call.1} parent=1 // pred_check
      _
    $region39: #{tpu_custom_call.1} parent=1 // pred_check_branch
      %36 = sbr.rel (0) target = $region41
    $region40: #{tpu_custom_call.1} parent=1 // pred_region
      _
    $region41: #{tpu_custom_call.1} parent=1 // pred_fallthru
      _
    // Predicated region
    $region42: #{tpu_custom_call.1} parent=1 // pred_check
      _
    $region43: #{tpu_custom_call.1} parent=1 // pred_check_branch
      %38 = sbr.rel (0) target = $region45
    $region44: #{tpu_custom_call.1} parent=1 // pred_region
      _
    $region45: #{tpu_custom_call.1} parent=1 // pred_fallthru
      _
    %v40 = vld [vmem:[%s0] sm:$0xff]
    %v41 = vld [vmem:[%s0 + $0x8] sm:$0xff]
    %v42 = vld [vmem:[%s0 + $0x10] sm:$0xff]
    %v43 = vld [vmem:[%s0 + $0x18] sm:$0xff]
    %v44 = vld [vmem:[%s0 + $0x20] sm:$0xff]
    %v45 = vld [vmem:[%s0 + $0x28] sm:$0xff]
    %v46 = vld [vmem:[%s0 + $0x30] sm:$0xff]
    %v47 = vld [vmem:[%s0 + $0x38] sm:$0xff]
    %v48 = vpack.c.bf16 %v41, %v40
    %v49 = vpack.c.bf16 %v43, %v42
    %v50 = vpack.c.bf16 %v45, %v44
    %v51 = vpack.c.bf16 %v47, %v46
    %v52 = vld [vmem:[%s1] sm:$0x3]
    %v53 = vld [vmem:[%s3] sm:$0x1]
    %v55 = vlaneseq
    %v56 = vshrl.u32 %v55, 7
    %v57 = vsub.s32 0, %v56
    %v58 = vrot.slane %v53, %v57
    %vm60 = vcmask 31744
    %v62 = vsel %vm60, %v48, 0
    %v65 = vsel %vm60, %v49, 0
    %v68 = vsel %vm60, %v50, 0
    %v71 = vsel %vm60, %v51, 0
    %vm73 = vcmask 1041408
    %v75 = vsel %vm73, %v52, 0
    %77 = vmatprep.subr.bf16.mxu0 0
    %78 = vmatpush1.bf16.msra.mxu0 0
    %79 = vmatprep.subr.bf16.mxu0 0
    %80 = vmatpush1.bf16.msra.mxu0 0
    %81 = vmatprep.subr.bf16.mxu0 0
    %82 = vmatpush1.bf16.msra.mxu0 0
    %83 = vmatprep.subr.bf16.mxu0 0
    %84 = vmatpush1.bf16.msra.mxu0 0
    %85 = vmatprep.subr.bf16.mxu0 0
    %86 = vmatpush1.bf16.msra.mxu0 0
    %87 = vmatprep.subr.bf16.mxu0 0
    %88 = vmatpush1.bf16.msra.mxu0 0
    %89 = vmatprep.subr.bf16.mxu0 0
    %90 = vmatpush1.bf16.msra.mxu0 0
    %91 = vmatprep.subr.bf16.mxu0 0
    %92 = vmatpush1.bf16.msra.mxu0 %v75
    %93 = vmatprep.subr.bf16.mxu0 0
    %94 = vmatpush2.bf16.msra.mxu0 0
    %95 = vmatprep.subr.bf16.mxu0 0
    %96 = vmatpush2.bf16.msra.mxu0 0
    %97 = vmatprep.subr.bf16.mxu0 0
    %98 = vmatpush2.bf16.msra.mxu0 0
    %99 = vmatprep.subr.bf16.mxu0 0
    %100 = vmatpush2.bf16.msra.mxu0 0
    %101 = vmatprep.subr.bf16.mxu0 0
    %102 = vmatpush2.bf16.msra.mxu0 0
    %103 = vmatprep.subr.bf16.mxu0 0
    %104 = vmatpush2.bf16.msra.mxu0 0
    %105 = vmatprep.subr.bf16.mxu0 0
    %106 = vmatpush2.bf16.msra.mxu0 0
    %107 = vmatprep.subr.bf16.mxu0 0
    %108 = vmatpush2.bf16.msra.mxu0 0
    %109 = vmatprep.mubr.bf16.mxu0 0
    %110 = vmatmul.mubr.bf16.gmra.mxu0 %v62
    %v111 = vpop.f32.mrf.mxu0
    %v112 = vadd.f32 %v58, %v111
    %v113 = vpop.f32.mrf.mxu0
    %v114 = vpop.f32.mrf.mxu0
    %v115 = vadd.f32 %v58, %v114
    %v116 = vpop.f32.mrf.mxu0
    %117 = vmatprep.mubr.bf16.mxu0 0
    %118 = vmatmul.mubr.bf16.gmra.mxu0 %v65
    %v119 = vpop.f32.mrf.mxu0
    %v120 = vadd.f32 %v58, %v119
    %v121 = vpop.f32.mrf.mxu0
    %v122 = vpop.f32.mrf.mxu0
    %v123 = vadd.f32 %v58, %v122
    %v124 = vpop.f32.mrf.mxu0
    %125 = vmatprep.mubr.bf16.mxu0 0
    %126 = vmatmul.mubr.bf16.gmra.mxu0 %v68
    %v127 = vpop.f32.mrf.mxu0
    %v128 = vadd.f32 %v58, %v127
    %v129 = vpop.f32.mrf.mxu0
    %v130 = vpop.f32.mrf.mxu0
    %v131 = vadd.f32 %v58, %v130
    %v132 = vpop.f32.mrf.mxu0
    %133 = vmatprep.mubr.bf16.mxu0 0
    %134 = vmatmul.mubr.bf16.gmra.mxu0 %v71
    %v135 = vpop.f32.mrf.mxu0
    %v136 = vadd.f32 %v58, %v135
    %v137 = vpop.f32.mrf.mxu0
    %v138 = vpop.f32.mrf.mxu0
    %v139 = vadd.f32 %v58, %v138
    %v140 = vpop.f32.mrf.mxu0
    %141 = vdwg.mxu0
    %v142 = vld [vmem:[%s2] sm:$0xf]
    %v143 = vld [vmem:[%s2 + $0x4] sm:$0xf]
    %v144 = vld [vmem:[%s2 + $0x8] sm:$0xf]
    %v145 = vld [vmem:[%s2 + $0xc] sm:$0xf]
    %v146 = vld [vmem:[%s4] sm:$0x1]
    %v148 = vlaneseq
    %v149 = vshrl.u32 %v148, 7
    %v150 = vsub.s32 0, %v149
    %v151 = vrot.slane %v146, %v150
    %v156 = vunpack.c.l.b16 %v142
    %v157 = vunpack.c.l.b16 %v143
    %v158 = vunpack.c.l.b16 %v144
    %v159 = vunpack.c.l.b16 %v145
    %v160 = vpack.c.b16 %v157, %v156
    %v161 = vpack.c.b16 %v159, %v158
    %vm164 = vcmask 261120
    %v166 = vsel %vm164, 0, 0
    %168 = vmatprep.subr.bf16.mxu0 0
    %169 = vmatpush1.bf16.msra.mxu0 0
    %170 = vmatprep.subr.bf16.mxu0 0
    %171 = vmatpush1.bf16.msra.mxu0 0
    %172 = vmatprep.subr.bf16.mxu0 0
    %173 = vmatpush1.bf16.msra.mxu0 0
    %174 = vmatprep.subr.bf16.mxu0 0
    %175 = vmatpush1.bf16.msra.mxu0 0
    %176 = vmatprep.subr.bf16.mxu0 0
    %177 = vmatpush1.bf16.msra.mxu0 0
    %178 = vmatprep.subr.bf16.mxu0 0
    %179 = vmatpush1.bf16.msra.mxu0 0
    %180 = vmatprep.subr.bf16.mxu0 0
    %181 = vmatpush1.bf16.msra.mxu0 %v161
    %182 = vmatprep.subr.bf16.mxu0 0
    %183 = vmatpush1.bf16.msra.mxu0 %v160
    %184 = vmatprep.subr.bf16.mxu0 0
    %185 = vmatpush2.bf16.msra.mxu0 0
    %186 = vmatprep.subr.bf16.mxu0 0
    %187 = vmatpush2.bf16.msra.mxu0 0
    %188 = vmatprep.subr.bf16.mxu0 0
    %189 = vmatpush2.bf16.msra.mxu0 0
    %190 = vmatprep.subr.bf16.mxu0 0
    %191 = vmatpush2.bf16.msra.mxu0 0
    %192 = vmatprep.subr.bf16.mxu0 0
    %193 = vmatpush2.bf16.msra.mxu0 0
    %194 = vmatprep.subr.bf16.mxu0 0
    %195 = vmatpush2.bf16.msra.mxu0 0
    %196 = vmatprep.subr.bf16.mxu0 0
    %197 = vmatpush2.bf16.msra.mxu0 0
    %198 = vmatprep.subr.bf16.mxu0 0
    %199 = vmatpush2.bf16.msra.mxu0 0
    %200 = vmatprep.mubr.bf16.mxu0 0
    %201 = vmatmul.mubr.bf16.gmra.mxu0 %v166
    %v202 = vpop.f32.mrf.mxu0
    %v203 = vadd.f32 0.0, %v202
    %v204 = vpop.f32.mrf.mxu0
    %v205 = vpop.f32.mrf.mxu0
    %v206 = vpop.f32.mrf.mxu0
    %207 = vdwg.mxu0
    %v208 = vadd.f32 %v112, %v203
    %v209 = vxor.u32 %v208, 2147483648
    %v210 = vmul.f32 %v209, 1.442695
    %v211 = vpow.pop %v210
    %v212 = vadd.f32 %v211, 1.0
    %v213 = vrcp.pop %v212
    %v214 = vmul.f32 1.0, %v213
    %215 = vrot.lane.b32.xlu0 %v151, 64
    %v216 = vpop.permute.xlu0 %215
    %v218 = vadd.f32 %v203, %v216
    %220 = vrot.lane.b32.xlu0 %v218, 64
    %v221 = vpop.permute.xlu0 %220
    %v223 = vmul.f32 %v214, %v221
    %225 = vrot.lane.b32.xlu0 %v223, 64
    %v226 = vpop.permute.xlu0 %225
    %v228 = vadd.f32 %v112, %v226
    %v229 = vtanh.pop %v228
    %v230 = vsub.f32 1.0, %v214
    %232 = vrot.lane.b32.xlu0 %v229, 96
    %v233 = vpop.permute.xlu0 %232
    %v235 = vmul.f32 %v230, %v233
    %v236 = vmul.f32 %v214, 0.0
    %v237 = vadd.f32 %v235, %v236
    %239 = vrot.lane.b32.xlu0 %v237, 96
    %v240 = vpop.permute.xlu0 %239
    %242 = vst.msk [vmem:[#allocation2] sm:$0xff] %vm164, %v240
    %v243 = vpack.c.bf16 %v237, %v237
    %245 = vrot.lane.b32.xlu0 %v243, 96
    %v246 = vpop.permute.xlu0 %245
    %v248 = vsel %vm164, %v246, 0
    %250 = vmatprep.subr.bf16.mxu0 0
    %251 = vmatpush1.bf16.msra.mxu0 0
    %252 = vmatprep.subr.bf16.mxu0 0
    %253 = vmatpush1.bf16.msra.mxu0 0
    %254 = vmatprep.subr.bf16.mxu0 0
    %255 = vmatpush1.bf16.msra.mxu0 0
    %256 = vmatprep.subr.bf16.mxu0 0
    %257 = vmatpush1.bf16.msra.mxu0 0
    %258 = vmatprep.subr.bf16.mxu0 0
    %259 = vmatpush1.bf16.msra.mxu0 0
    %260 = vmatprep.subr.bf16.mxu0 0
    %261 = vmatpush1.bf16.msra.mxu0 0
    %262 = vmatprep.subr.bf16.mxu0 0
    %263 = vmatpush1.bf16.msra.mxu0 %v161
    %264 = vmatprep.subr.bf16.mxu0 0
    %265 = vmatpush1.bf16.msra.mxu0 %v160
    %266 = vmatprep.subr.bf16.mxu0 0
    %267 = vmatpush2.bf16.msra.mxu0 0
    %268 = vmatprep.subr.bf16.mxu0 0
    %269 = vmatpush2.bf16.msra.mxu0 0
    %270 = vmatprep.subr.bf16.mxu0 0
    %271 = vmatpush2.bf16.msra.mxu0 0
    %272 = vmatprep.subr.bf16.mxu0 0
    %273 = vmatpush2.bf16.msra.mxu0 0
    %274 = vmatprep.subr.bf16.mxu0 0
    %275 = vmatpush2.bf16.msra.mxu0 0
    %276 = vmatprep.subr.bf16.mxu0 0
    %277 = vmatpush2.bf16.msra.mxu0 0
    %278 = vmatprep.subr.bf16.mxu0 0
    %279 = vmatpush2.bf16.msra.mxu0 0
    %280 = vmatprep.subr.bf16.mxu0 0
    %281 = vmatpush2.bf16.msra.mxu0 0
    %282 = vmatprep.mubr.bf16.mxu0 0
    %283 = vmatmul.mubr.bf16.gmra.mxu0 %v248
    %v284 = vpop.f32.mrf.mxu0
    %v285 = vadd.f32 0.0, %v284
    %v286 = vpop.f32.mrf.mxu0
    %v287 = vpop.f32.mrf.mxu0
    %v288 = vpop.f32.mrf.mxu0
    %289 = vdwg.mxu0
    %v290 = vadd.f32 %v115, %v285
    %v291 = vxor.u32 %v290, 2147483648
    %v292 = vmul.f32 %v291, 1.442695
    %v293 = vpow.pop %v292
    %v294 = vadd.f32 %v293, 1.0
    %v295 = vrcp.pop %v294
    %v296 = vmul.f32 1.0, %v295
    %v297 = vadd.f32 %v285, %v216
    %299 = vrot.lane.b32.xlu0 %v297, 64
    %v300 = vpop.permute.xlu0 %299
    %v302 = vmul.f32 %v296, %v300
    %304 = vrot.lane.b32.xlu0 %v302, 64
    %v305 = vpop.permute.xlu0 %304
    %v307 = vadd.f32 %v115, %v305
    %v308 = vtanh.pop %v307
    %v309 = vsub.f32 1.0, %v296
    %311 = vrot.lane.b32.xlu0 %v308, 96
    %v312 = vpop.permute.xlu0 %311
    %v314 = vmul.f32 %v309, %v312
    %v315 = vmul.f32 %v296, %v237
    %v316 = vadd.f32 %v314, %v315
    %318 = vrot.lane.b32.xlu0 %v316, 96
    %v319 = vpop.permute.xlu0 %318
    %s321 = scalar_lea.vmem [#allocation2], 8
    %322 = vst.msk [vmem:[%s321] sm:$0xff] %vm164, %v319
    %v323 = vpack.c.bf16 %v316, %v316
    %325 = vrot.lane.b32.xlu0 %v323, 96
    %v326 = vpop.permute.xlu0 %325
    %v328 = vsel %vm164, %v326, 0
    %330 = vmatprep.subr.bf16.mxu0 0
    %331 = vmatpush1.bf16.msra.mxu0 0
    %332 = vmatprep.subr.bf16.mxu0 0
    %333 = vmatpush1.bf16.msra.mxu0 0
    %334 = vmatprep.subr.bf16.mxu0 0
    %335 = vmatpush1.bf16.msra.mxu0 0
    %336 = vmatprep.subr.bf16.mxu0 0
    %337 = vmatpush1.bf16.msra.mxu0 0
    %338 = vmatprep.subr.bf16.mxu0 0
    %339 = vmatpush1.bf16.msra.mxu0 0
    %340 = vmatprep.subr.bf16.mxu0 0
    %341 = vmatpush1.bf16.msra.mxu0 0
    %342 = vmatprep.subr.bf16.mxu0 0
    %343 = vmatpush1.bf16.msra.mxu0 %v161
    %344 = vmatprep.subr.bf16.mxu0 0
    %345 = vmatpush1.bf16.msra.mxu0 %v160
    %346 = vmatprep.subr.bf16.mxu0 0
    %347 = vmatpush2.bf16.msra.mxu0 0
    %348 = vmatprep.subr.bf16.mxu0 0
    %349 = vmatpush2.bf16.msra.mxu0 0
    %350 = vmatprep.subr.bf16.mxu0 0
    %351 = vmatpush2.bf16.msra.mxu0 0
    %352 = vmatprep.subr.bf16.mxu0 0
    %353 = vmatpush2.bf16.msra.mxu0 0
    %354 = vmatprep.subr.bf16.mxu0 0
    %355 = vmatpush2.bf16.msra.mxu0 0
    %356 = vmatprep.subr.bf16.mxu0 0
    %357 = vmatpush2.bf16.msra.mxu0 0
    %358 = vmatprep.subr.bf16.mxu0 0
    %359 = vmatpush2.bf16.msra.mxu0 0
    %360 = vmatprep.subr.bf16.mxu0 0
    %361 = vmatpush2.bf16.msra.mxu0 0
    %362 = vmatprep.mubr.bf16.mxu0 0
    %363 = vmatmul.mubr.bf16.gmra.mxu0 %v328
    %v364 = vpop.f32.mrf.mxu0
    %v365 = vadd.f32 0.0, %v364
    %v366 = vpop.f32.mrf.mxu0
    %v367 = vpop.f32.mrf.mxu0
    %v368 = vpop.f32.mrf.mxu0
    %369 = vdwg.mxu0
    %v370 = vadd.f32 %v120, %v365
    %v371 = vxor.u32 %v370, 2147483648
    %v372 = vmul.f32 %v371, 1.442695
    %v373 = vpow.pop %v372
    %v374 = vadd.f32 %v373, 1.0
    %v375 = vrcp.pop %v374
    %v376 = vmul.f32 1.0, %v375
    %v377 = vadd.f32 %v365, %v216
    %379 = vrot.lane.b32.xlu0 %v377, 64
    %v380 = vpop.permute.xlu0 %379
    %v382 = vmul.f32 %v376, %v380
    %384 = vrot.lane.b32.xlu0 %v382, 64
    %v385 = vpop.permute.xlu0 %384
    %v387 = vadd.f32 %v120, %v385
    %v388 = vtanh.pop %v387
    %v389 = vsub.f32 1.0, %v376
    %391 = vrot.lane.b32.xlu0 %v388, 96
    %v392 = vpop.permute.xlu0 %391
    %v394 = vmul.f32 %v389, %v392
    %v395 = vmul.f32 %v376, %v316
    %v396 = vadd.f32 %v394, %v395
    %398 = vrot.lane.b32.xlu0 %v396, 96
    %v399 = vpop.permute.xlu0 %398
    %s401 = scalar_lea.vmem [#allocation2], 16
    %402 = vst.msk [vmem:[%s401] sm:$0xff] %vm164, %v399
    %v403 = vpack.c.bf16 %v396, %v396
    %405 = vrot.lane.b32.xlu0 %v403, 96
    %v406 = vpop.permute.xlu0 %405
    %v408 = vsel %vm164, %v406, 0
    %410 = vmatprep.subr.bf16.mxu0 0
    %411 = vmatpush1.bf16.msra.mxu0 0
    %412 = vmatprep.subr.bf16.mxu0 0
    %413 = vmatpush1.bf16.msra.mxu0 0
    %414 = vmatprep.subr.bf16.mxu0 0
    %415 = vmatpush1.bf16.msra.mxu0 0
    %416 = vmatprep.subr.bf16.mxu0 0
    %417 = vmatpush1.bf16.msra.mxu0 0
    %418 = vmatprep.subr.bf16.mxu0 0
    %419 = vmatpush1.bf16.msra.mxu0 0
    %420 = vmatprep.subr.bf16.mxu0 0
    %421 = vmatpush1.bf16.msra.mxu0 0
    %422 = vmatprep.subr.bf16.mxu0 0
    %423 = vmatpush1.bf16.msra.mxu0 %v161
    %424 = vmatprep.subr.bf16.mxu0 0
    %425 = vmatpush1.bf16.msra.mxu0 %v160
    %426 = vmatprep.subr.bf16.mxu0 0
    %427 = vmatpush2.bf16.msra.mxu0 0
    %428 = vmatprep.subr.bf16.mxu0 0
    %429 = vmatpush2.bf16.msra.mxu0 0
    %430 = vmatprep.subr.bf16.mxu0 0
    %431 = vmatpush2.bf16.msra.mxu0 0
    %432 = vmatprep.subr.bf16.mxu0 0
    %433 = vmatpush2.bf16.msra.mxu0 0
    %434 = vmatprep.subr.bf16.mxu0 0
    %435 = vmatpush2.bf16.msra.mxu0 0
    %436 = vmatprep.subr.bf16.mxu0 0
    %437 = vmatpush2.bf16.msra.mxu0 0
    %438 = vmatprep.subr.bf16.mxu0 0
    %439 = vmatpush2.bf16.msra.mxu0 0
    %440 = vmatprep.subr.bf16.mxu0 0
    %441 = vmatpush2.bf16.msra.mxu0 0
    %442 = vmatprep.mubr.bf16.mxu0 0
    %443 = vmatmul.mubr.bf16.gmra.mxu0 %v408
    %v444 = vpop.f32.mrf.mxu0
    %v445 = vadd.f32 0.0, %v444
    %v446 = vpop.f32.mrf.mxu0
    %v447 = vpop.f32.mrf.mxu0
    %v448 = vpop.f32.mrf.mxu0
    %449 = vdwg.mxu0
    %v450 = vadd.f32 %v123, %v445
    %v451 = vxor.u32 %v450, 2147483648
    %v452 = vmul.f32 %v451, 1.442695
    %v453 = vpow.pop %v452
    %v454 = vadd.f32 %v453, 1.0
    %v455 = vrcp.pop %v454
    %v456 = vmul.f32 1.0, %v455
    %v457 = vadd.f32 %v445, %v216
    %459 = vrot.lane.b32.xlu0 %v457, 64
    %v460 = vpop.permute.xlu0 %459
    %v462 = vmul.f32 %v456, %v460
    %464 = vrot.lane.b32.xlu0 %v462, 64
    %v465 = vpop.permute.xlu0 %464
    %v467 = vadd.f32 %v123, %v465
    %v468 = vtanh.pop %v467
    %v469 = vsub.f32 1.0, %v456
    %471 = vrot.lane.b32.xlu0 %v468, 96
    %v472 = vpop.permute.xlu0 %471
    %v474 = vmul.f32 %v469, %v472
    %v475 = vmul.f32 %v456, %v396
    %v476 = vadd.f32 %v474, %v475
    %478 = vrot.lane.b32.xlu0 %v476, 96
    %v479 = vpop.permute.xlu0 %478
    %s481 = scalar_lea.vmem [#allocation2], 24
    %482 = vst.msk [vmem:[%s481] sm:$0xff] %vm164, %v479
    %v483 = vpack.c.bf16 %v476, %v476
    %485 = vrot.lane.b32.xlu0 %v483, 96
    %v486 = vpop.permute.xlu0 %485
    %v488 = vsel %vm164, %v486, 0
    %490 = vmatprep.subr.bf16.mxu0 0
    %491 = vmatpush1.bf16.msra.mxu0 0
    %492 = vmatprep.subr.bf16.mxu0 0
    %493 = vmatpush1.bf16.msra.mxu0 0
    %494 = vmatprep.subr.bf16.mxu0 0
    %495 = vmatpush1.bf16.msra.mxu0 0
    %496 = vmatprep.subr.bf16.mxu0 0
    %497 = vmatpush1.bf16.msra.mxu0 0
    %498 = vmatprep.subr.bf16.mxu0 0
    %499 = vmatpush1.bf16.msra.mxu0 0
    %500 = vmatprep.subr.bf16.mxu0 0
    %501 = vmatpush1.bf16.msra.mxu0 0
    %502 = vmatprep.subr.bf16.mxu0 0
    %503 = vmatpush1.bf16.msra.mxu0 %v161
    %504 = vmatprep.subr.bf16.mxu0 0
    %505 = vmatpush1.bf16.msra.mxu0 %v160
    %506 = vmatprep.subr.bf16.mxu0 0
    %507 = vmatpush2.bf16.msra.mxu0 0
    %508 = vmatprep.subr.bf16.mxu0 0
    %509 = vmatpush2.bf16.msra.mxu0 0
    %510 = vmatprep.subr.bf16.mxu0 0
    %511 = vmatpush2.bf16.msra.mxu0 0
    %512 = vmatprep.subr.bf16.mxu0 0
    %513 = vmatpush2.bf16.msra.mxu0 0
    %514 = vmatprep.subr.bf16.mxu0 0
    %515 = vmatpush2.bf16.msra.mxu0 0
    %516 = vmatprep.subr.bf16.mxu0 0
    %517 = vmatpush2.bf16.msra.mxu0 0
    %518 = vmatprep.subr.bf16.mxu0 0
    %519 = vmatpush2.bf16.msra.mxu0 0
    %520 = vmatprep.subr.bf16.mxu0 0
    %521 = vmatpush2.bf16.msra.mxu0 0
    %522 = vmatprep.mubr.bf16.mxu0 0
    %523 = vmatmul.mubr.bf16.gmra.mxu0 %v488
    %v524 = vpop.f32.mrf.mxu0
    %v525 = vadd.f32 0.0, %v524
    %v526 = vpop.f32.mrf.mxu0
    %v527 = vpop.f32.mrf.mxu0
    %v528 = vpop.f32.mrf.mxu0
    %529 = vdwg.mxu0
    %v530 = vadd.f32 %v128, %v525
    %v531 = vxor.u32 %v530, 2147483648
    %v532 = vmul.f32 %v531, 1.442695
    %v533 = vpow.pop %v532
    %v534 = vadd.f32 %v533, 1.0
    %v535 = vrcp.pop %v534
    %v536 = vmul.f32 1.0, %v535
    %v537 = vadd.f32 %v525, %v216
    %539 = vrot.lane.b32.xlu0 %v537, 64
    %v540 = vpop.permute.xlu0 %539
    %v542 = vmul.f32 %v536, %v540
    %544 = vrot.lane.b32.xlu0 %v542, 64
    %v545 = vpop.permute.xlu0 %544
    %v547 = vadd.f32 %v128, %v545
    %v548 = vtanh.pop %v547
    %v549 = vsub.f32 1.0, %v536
    %551 = vrot.lane.b32.xlu0 %v548, 96
    %v552 = vpop.permute.xlu0 %551
    %v554 = vmul.f32 %v549, %v552
    %v555 = vmul.f32 %v536, %v476
    %v556 = vadd.f32 %v554, %v555
    %558 = vrot.lane.b32.xlu0 %v556, 96
    %v559 = vpop.permute.xlu0 %558
    %s561 = scalar_lea.vmem [#allocation2], 32
    %562 = vst.msk [vmem:[%s561] sm:$0xff] %vm164, %v559
    %v563 = vpack.c.bf16 %v556, %v556
    %565 = vrot.lane.b32.xlu0 %v563, 96
    %v566 = vpop.permute.xlu0 %565
    %v568 = vsel %vm164, %v566, 0
    %570 = vmatprep.subr.bf16.mxu0 0
    %571 = vmatpush1.bf16.msra.mxu0 0
    %572 = vmatprep.subr.bf16.mxu0 0
    %573 = vmatpush1.bf16.msra.mxu0 0
    %574 = vmatprep.subr.bf16.mxu0 0
    %575 = vmatpush1.bf16.msra.mxu0 0
    %576 = vmatprep.subr.bf16.mxu0 0
    %577 = vmatpush1.bf16.msra.mxu0 0
    %578 = vmatprep.subr.bf16.mxu0 0
    %579 = vmatpush1.bf16.msra.mxu0 0
    %580 = vmatprep.subr.bf16.mxu0 0
    %581 = vmatpush1.bf16.msra.mxu0 0
    %582 = vmatprep.subr.bf16.mxu0 0
    %583 = vmatpush1.bf16.msra.mxu0 %v161
    %584 = vmatprep.subr.bf16.mxu0 0
    %585 = vmatpush1.bf16.msra.mxu0 %v160
    %586 = vmatprep.subr.bf16.mxu0 0
    %587 = vmatpush2.bf16.msra.mxu0 0
    %588 = vmatprep.subr.bf16.mxu0 0
    %589 = vmatpush2.bf16.msra.mxu0 0
    %590 = vmatprep.subr.bf16.mxu0 0
    %591 = vmatpush2.bf16.msra.mxu0 0
    %592 = vmatprep.subr.bf16.mxu0 0
    %593 = vmatpush2.bf16.msra.mxu0 0
    %594 = vmatprep.subr.bf16.mxu0 0
    %595 = vmatpush2.bf16.msra.mxu0 0
    %596 = vmatprep.subr.bf16.mxu0 0
    %597 = vmatpush2.bf16.msra.mxu0 0
    %598 = vmatprep.subr.bf16.mxu0 0
    %599 = vmatpush2.bf16.msra.mxu0 0
    %600 = vmatprep.subr.bf16.mxu0 0
    %601 = vmatpush2.bf16.msra.mxu0 0
    %602 = vmatprep.mubr.bf16.mxu0 0
    %603 = vmatmul.mubr.bf16.gmra.mxu0 %v568
    %v604 = vpop.f32.mrf.mxu0
    %v605 = vadd.f32 0.0, %v604
    %v606 = vpop.f32.mrf.mxu0
    %v607 = vpop.f32.mrf.mxu0
    %v608 = vpop.f32.mrf.mxu0
    %609 = vdwg.mxu0
    %v610 = vadd.f32 %v131, %v605
    %v611 = vxor.u32 %v610, 2147483648
    %v612 = vmul.f32 %v611, 1.442695
    %v613 = vpow.pop %v612
    %v614 = vadd.f32 %v613, 1.0
    %v615 = vrcp.pop %v614
    %v616 = vmul.f32 1.0, %v615
    %v617 = vadd.f32 %v605, %v216
    %619 = vrot.lane.b32.xlu0 %v617, 64
    %v620 = vpop.permute.xlu0 %619
    %v622 = vmul.f32 %v616, %v620
    %624 = vrot.lane.b32.xlu0 %v622, 64
    %v625 = vpop.permute.xlu0 %624
    %v627 = vadd.f32 %v131, %v625
    %v628 = vtanh.pop %v627
    %v629 = vsub.f32 1.0, %v616
    %631 = vrot.lane.b32.xlu0 %v628, 96
    %v632 = vpop.permute.xlu0 %631
    %v634 = vmul.f32 %v629, %v632
    %v635 = vmul.f32 %v616, %v556
    %v636 = vadd.f32 %v634, %v635
    %638 = vrot.lane.b32.xlu0 %v636, 96
    %v639 = vpop.permute.xlu0 %638
    %s641 = scalar_lea.vmem [#allocation2], 40
    %642 = vst.msk [vmem:[%s641] sm:$0xff] %vm164, %v639
    %v643 = vpack.c.bf16 %v636, %v636
    %645 = vrot.lane.b32.xlu0 %v643, 96
    %v646 = vpop.permute.xlu0 %645
    %v648 = vsel %vm164, %v646, 0
    %650 = vmatprep.subr.bf16.mxu0 0
    %651 = vmatpush1.bf16.msra.mxu0 0
    %652 = vmatprep.subr.bf16.mxu0 0
    %653 = vmatpush1.bf16.msra.mxu0 0
    %654 = vmatprep.subr.bf16.mxu0 0
    %655 = vmatpush1.bf16.msra.mxu0 0
    %656 = vmatprep.subr.bf16.mxu0 0
    %657 = vmatpush1.bf16.msra.mxu0 0
    %658 = vmatprep.subr.bf16.mxu0 0
    %659 = vmatpush1.bf16.msra.mxu0 0
    %660 = vmatprep.subr.bf16.mxu0 0
    %661 = vmatpush1.bf16.msra.mxu0 0
    %662 = vmatprep.subr.bf16.mxu0 0
    %663 = vmatpush1.bf16.msra.mxu0 %v161
    %664 = vmatprep.subr.bf16.mxu0 0
    %665 = vmatpush1.bf16.msra.mxu0 %v160
    %666 = vmatprep.subr.bf16.mxu0 0
    %667 = vmatpush2.bf16.msra.mxu0 0
    %668 = vmatprep.subr.bf16.mxu0 0
    %669 = vmatpush2.bf16.msra.mxu0 0
    %670 = vmatprep.subr.bf16.mxu0 0
    %671 = vmatpush2.bf16.msra.mxu0 0
    %672 = vmatprep.subr.bf16.mxu0 0
    %673 = vmatpush2.bf16.msra.mxu0 0
    %674 = vmatprep.subr.bf16.mxu0 0
    %675 = vmatpush2.bf16.msra.mxu0 0
    %676 = vmatprep.subr.bf16.mxu0 0
    %677 = vmatpush2.bf16.msra.mxu0 0
    %678 = vmatprep.subr.bf16.mxu0 0
    %679 = vmatpush2.bf16.msra.mxu0 0
    %680 = vmatprep.subr.bf16.mxu0 0
    %681 = vmatpush2.bf16.msra.mxu0 0
    %682 = vmatprep.mubr.bf16.mxu0 0
    %683 = vmatmul.mubr.bf16.gmra.mxu0 %v648
    %v684 = vpop.f32.mrf.mxu0
    %v685 = vadd.f32 0.0, %v684
    %v686 = vpop.f32.mrf.mxu0
    %v687 = vpop.f32.mrf.mxu0
    %v688 = vpop.f32.mrf.mxu0
    %689 = vdwg.mxu0
    %v690 = vadd.f32 %v136, %v685
    %v691 = vxor.u32 %v690, 2147483648
    %v692 = vmul.f32 %v691, 1.442695
    %v693 = vpow.pop %v692
    %v694 = vadd.f32 %v693, 1.0
    %v695 = vrcp.pop %v694
    %v696 = vmul.f32 1.0, %v695
    %v697 = vadd.f32 %v685, %v216
    %699 = vrot.lane.b32.xlu0 %v697, 64
    %v700 = vpop.permute.xlu0 %699
    %v702 = vmul.f32 %v696, %v700
    %704 = vrot.lane.b32.xlu0 %v702, 64
    %v705 = vpop.permute.xlu0 %704
    %v707 = vadd.f32 %v136, %v705
    %v708 = vtanh.pop %v707
    %v709 = vsub.f32 1.0, %v696
    %711 = vrot.lane.b32.xlu0 %v708, 96
    %v712 = vpop.permute.xlu0 %711
    %v714 = vmul.f32 %v709, %v712
    %v715 = vmul.f32 %v696, %v636
    %v716 = vadd.f32 %v714, %v715
    %718 = vrot.lane.b32.xlu0 %v716, 96
    %v719 = vpop.permute.xlu0 %718
    %s721 = scalar_lea.vmem [#allocation2], 48
    %722 = vst.msk [vmem:[%s721] sm:$0xff] %vm164, %v719
    %v723 = vpack.c.bf16 %v716, %v716
    %725 = vrot.lane.b32.xlu0 %v723, 96
    %v726 = vpop.permute.xlu0 %725
    %v728 = vsel %vm164, %v726, 0
    %730 = vmatprep.subr.bf16.mxu0 0
    %731 = vmatpush1.bf16.msra.mxu0 0
    %732 = vmatprep.subr.bf16.mxu0 0
    %733 = vmatpush1.bf16.msra.mxu0 0
    %734 = vmatprep.subr.bf16.mxu0 0
    %735 = vmatpush1.bf16.msra.mxu0 0
    %736 = vmatprep.subr.bf16.mxu0 0
    %737 = vmatpush1.bf16.msra.mxu0 0
    %738 = vmatprep.subr.bf16.mxu0 0
    %739 = vmatpush1.bf16.msra.mxu0 0
    %740 = vmatprep.subr.bf16.mxu0 0
    %741 = vmatpush1.bf16.msra.mxu0 0
    %742 = vmatprep.subr.bf16.mxu0 0
    %743 = vmatpush1.bf16.msra.mxu0 %v161
    %744 = vmatprep.subr.bf16.mxu0 0
    %745 = vmatpush1.bf16.msra.mxu0 %v160
    %746 = vmatprep.subr.bf16.mxu0 0
    %747 = vmatpush2.bf16.msra.mxu0 0
    %748 = vmatprep.subr.bf16.mxu0 0
    %749 = vmatpush2.bf16.msra.mxu0 0
    %750 = vmatprep.subr.bf16.mxu0 0
    %751 = vmatpush2.bf16.msra.mxu0 0
    %752 = vmatprep.subr.bf16.mxu0 0
    %753 = vmatpush2.bf16.msra.mxu0 0
    %754 = vmatprep.subr.bf16.mxu0 0
    %755 = vmatpush2.bf16.msra.mxu0 0
    %756 = vmatprep.subr.bf16.mxu0 0
    %757 = vmatpush2.bf16.msra.mxu0 0
    %758 = vmatprep.subr.bf16.mxu0 0
    %759 = vmatpush2.bf16.msra.mxu0 0
    %760 = vmatprep.subr.bf16.mxu0 0
    %761 = vmatpush2.bf16.msra.mxu0 0
    %762 = vmatprep.mubr.bf16.mxu0 0
    %763 = vmatmul.mubr.bf16.gmra.mxu0 %v728
    %v764 = vpop.f32.mrf.mxu0
    %v765 = vadd.f32 0.0, %v764
    %v766 = vpop.f32.mrf.mxu0
    %v767 = vpop.f32.mrf.mxu0
    %v768 = vpop.f32.mrf.mxu0
    %769 = vdwg.mxu0
    %v770 = vadd.f32 %v139, %v765
    %v771 = vxor.u32 %v770, 2147483648
    %v772 = vmul.f32 %v771, 1.442695
    %v773 = vpow.pop %v772
    %v774 = vadd.f32 %v773, 1.0
    %v775 = vrcp.pop %v774
    %v776 = vmul.f32 1.0, %v775
    %v777 = vadd.f32 %v765, %v216
    %779 = vrot.lane.b32.xlu0 %v777, 64
    %v780 = vpop.permute.xlu0 %779
    %v782 = vmul.f32 %v776, %v780
    %784 = vrot.lane.b32.xlu0 %v782, 64
    %v785 = vpop.permute.xlu0 %784
    %v787 = vadd.f32 %v139, %v785
    %v788 = vtanh.pop %v787
    %v789 = vsub.f32 1.0, %v776
    %791 = vrot.lane.b32.xlu0 %v788, 96
    %v792 = vpop.permute.xlu0 %791
    %v794 = vmul.f32 %v789, %v792
    %v795 = vmul.f32 %v776, %v716
    %v796 = vadd.f32 %v794, %v795
    %798 = vrot.lane.b32.xlu0 %v796, 96
    %v799 = vpop.permute.xlu0 %798
    %s801 = scalar_lea.vmem [#allocation2], 56
    %802 = vst.msk [vmem:[%s801] sm:$0xff] %vm164, %v799
    %v803 = vld [vmem:[#allocation2] sm:$0xff]
    %v804 = vld [vmem:[#allocation2 + $0x8] sm:$0xff]
    %v805 = vld [vmem:[#allocation2 + $0x10] sm:$0xff]
    %v806 = vld [vmem:[#allocation2 + $0x18] sm:$0xff]
    %v807 = vld [vmem:[#allocation2 + $0x20] sm:$0xff]
    %v808 = vld [vmem:[#allocation2 + $0x28] sm:$0xff]
    %v809 = vld [vmem:[#allocation2 + $0x30] sm:$0xff]
    %v810 = vld [vmem:[#allocation2 + $0x38] sm:$0xff]
    %v811 = vpack.c.bf16 %v804, %v803
    %v812 = vpack.c.bf16 %v806, %v805
    %v813 = vpack.c.bf16 %v808, %v807
    %v814 = vpack.c.bf16 %v810, %v809
    %v815 = vld [vmem:[%s5] sm:$0xf]
    %v816 = vld [vmem:[%s5 + $0x4] sm:$0xf]
    %v817 = vld [vmem:[%s5 + $0x8] sm:$0xf]
    %v818 = vld [vmem:[%s5 + $0xc] sm:$0xf]
    %v819 = vld [vmem:[%s7] sm:$0x1]
    %v821 = vlaneseq
    %v822 = vshrl.u32 %v821, 7
    %v823 = vsub.s32 0, %v822
    %v824 = vrot.slane %v819, %v823
    %v830 = vunpack.c.l.b16 %v815
    %v831 = vunpack.c.l.b16 %v816
    %v832 = vunpack.c.l.b16 %v817
    %v833 = vunpack.c.l.b16 %v818
    %v834 = vpack.c.b16 %v831, %v830
    %v835 = vpack.c.b16 %v833, %v832
    %v839 = vsel %vm164, %v811, 0
    %v842 = vsel %vm164, %v812, 0
    %v845 = vsel %vm164, %v813, 0
    %v848 = vsel %vm164, %v814, 0
    %850 = vmatprep.subr.bf16.mxu0 0
    %851 = vmatpush1.bf16.msra.mxu0 0
    %852 = vmatprep.subr.bf16.mxu0 0
    %853 = vmatpush1.bf16.msra.mxu0 0
    %854 = vmatprep.subr.bf16.mxu0 0
    %855 = vmatpush1.bf16.msra.mxu0 0
    %856 = vmatprep.subr.bf16.mxu0 0
    %857 = vmatpush1.bf16.msra.mxu0 0
    %858 = vmatprep.subr.bf16.mxu0 0
    %859 = vmatpush1.bf16.msra.mxu0 0
    %860 = vmatprep.subr.bf16.mxu0 0
    %861 = vmatpush1.bf16.msra.mxu0 0
    %862 = vmatprep.subr.bf16.mxu0 0
    %863 = vmatpush1.bf16.msra.mxu0 %v835
    %864 = vmatprep.subr.bf16.mxu0 0
    %865 = vmatpush1.bf16.msra.mxu0 %v834
    %866 = vmatprep.subr.bf16.mxu0 0
    %867 = vmatpush2.bf16.msra.mxu0 0
    %868 = vmatprep.subr.bf16.mxu0 0
    %869 = vmatpush2.bf16.msra.mxu0 0
    %870 = vmatprep.subr.bf16.mxu0 0
    %871 = vmatpush2.bf16.msra.mxu0 0
    %872 = vmatprep.subr.bf16.mxu0 0
    %873 = vmatpush2.bf16.msra.mxu0 0
    %874 = vmatprep.subr.bf16.mxu0 0
    %875 = vmatpush2.bf16.msra.mxu0 0
    %876 = vmatprep.subr.bf16.mxu0 0
    %877 = vmatpush2.bf16.msra.mxu0 0
    %878 = vmatprep.subr.bf16.mxu0 0
    %879 = vmatpush2.bf16.msra.mxu0 0
    %880 = vmatprep.subr.bf16.mxu0 0
    %881 = vmatpush2.bf16.msra.mxu0 0
    %882 = vmatprep.mubr.bf16.mxu0 0
    %883 = vmatmul.mubr.bf16.gmra.mxu0 %v839
    %v884 = vpop.f32.mrf.mxu0
    %v885 = vadd.f32 %v824, %v884
    %v886 = vpop.f32.mrf.mxu0
    %v887 = vpop.f32.mrf.mxu0
    %v888 = vadd.f32 %v824, %v887
    %v889 = vpop.f32.mrf.mxu0
    %890 = vmatprep.mubr.bf16.mxu0 0
    %891 = vmatmul.mubr.bf16.gmra.mxu0 %v842
    %v892 = vpop.f32.mrf.mxu0
    %v893 = vadd.f32 %v824, %v892
    %v894 = vpop.f32.mrf.mxu0
    %v895 = vpop.f32.mrf.mxu0
    %v896 = vadd.f32 %v824, %v895
    %v897 = vpop.f32.mrf.mxu0
    %898 = vmatprep.mubr.bf16.mxu0 0
    %899 = vmatmul.mubr.bf16.gmra.mxu0 %v845
    %v900 = vpop.f32.mrf.mxu0
    %v901 = vadd.f32 %v824, %v900
    %v902 = vpop.f32.mrf.mxu0
    %v903 = vpop.f32.mrf.mxu0
    %v904 = vadd.f32 %v824, %v903
    %v905 = vpop.f32.mrf.mxu0
    %906 = vmatprep.mubr.bf16.mxu0 0
    %907 = vmatmul.mubr.bf16.gmra.mxu0 %v848
    %v908 = vpop.f32.mrf.mxu0
    %v909 = vadd.f32 %v824, %v908
    %v910 = vpop.f32.mrf.mxu0
    %v911 = vpop.f32.mrf.mxu0
    %v912 = vadd.f32 %v824, %v911
    %v913 = vpop.f32.mrf.mxu0
    %914 = vdwg.mxu0
    %v915 = vld [vmem:[%s6] sm:$0xf]
    %v916 = vld [vmem:[%s6 + $0x4] sm:$0xf]
    %v917 = vld [vmem:[%s6 + $0x8] sm:$0xf]
    %v918 = vld [vmem:[%s6 + $0xc] sm:$0xf]
    %v919 = vld [vmem:[%s8] sm:$0x1]
    %v921 = vlaneseq
    %v922 = vshrl.u32 %v921, 7
    %v923 = vsub.s32 0, %v922
    %v924 = vrot.slane %v919, %v923
    %v929 = vunpack.c.l.b16 %v915
    %v930 = vunpack.c.l.b16 %v916
    %v931 = vunpack.c.l.b16 %v917
    %v932 = vunpack.c.l.b16 %v918
    %v933 = vpack.c.b16 %v930, %v929
    %v934 = vpack.c.b16 %v932, %v931
    %937 = vmatprep.subr.bf16.mxu0 0
    %938 = vmatpush1.bf16.msra.mxu0 0
    %939 = vmatprep.subr.bf16.mxu0 0
    %940 = vmatpush1.bf16.msra.mxu0 0
    %941 = vmatprep.subr.bf16.mxu0 0
    %942 = vmatpush1.bf16.msra.mxu0 0
    %943 = vmatprep.subr.bf16.mxu0 0
    %944 = vmatpush1.bf16.msra.mxu0 0
    %945 = vmatprep.subr.bf16.mxu0 0
    %946 = vmatpush1.bf16.msra.mxu0 0
    %947 = vmatprep.subr.bf16.mxu0 0
    %948 = vmatpush1.bf16.msra.mxu0 0
    %949 = vmatprep.subr.bf16.mxu0 0
    %950 = vmatpush1.bf16.msra.mxu0 %v934
    %951 = vmatprep.subr.bf16.mxu0 0
    %952 = vmatpush1.bf16.msra.mxu0 %v933
    %953 = vmatprep.subr.bf16.mxu0 0
    %954 = vmatpush2.bf16.msra.mxu0 0
    %955 = vmatprep.subr.bf16.mxu0 0
    %956 = vmatpush2.bf16.msra.mxu0 0
    %957 = vmatprep.subr.bf16.mxu0 0
    %958 = vmatpush2.bf16.msra.mxu0 0
    %959 = vmatprep.subr.bf16.mxu0 0
    %960 = vmatpush2.bf16.msra.mxu0 0
    %961 = vmatprep.subr.bf16.mxu0 0
    %962 = vmatpush2.bf16.msra.mxu0 0
    %963 = vmatprep.subr.bf16.mxu0 0
    %964 = vmatpush2.bf16.msra.mxu0 0
    %965 = vmatprep.subr.bf16.mxu0 0
    %966 = vmatpush2.bf16.msra.mxu0 0
    %967 = vmatprep.subr.bf16.mxu0 0
    %968 = vmatpush2.bf16.msra.mxu0 0
    %969 = vmatprep.mubr.bf16.mxu0 0
    %970 = vmatmul.mubr.bf16.gmra.mxu0 %v166
    %v971 = vpop.f32.mrf.mxu0
    %v972 = vadd.f32 0.0, %v971
    %v973 = vpop.f32.mrf.mxu0
    %v974 = vpop.f32.mrf.mxu0
    %v975 = vpop.f32.mrf.mxu0
    %976 = vdwg.mxu0
    %v977 = vadd.f32 %v885, %v972
    %v978 = vxor.u32 %v977, 2147483648
    %v979 = vmul.f32 %v978, 1.442695
    %v980 = vpow.pop %v979
    %v981 = vadd.f32 %v980, 1.0
    %v982 = vrcp.pop %v981
    %v983 = vmul.f32 1.0, %v982
    %984 = vrot.lane.b32.xlu0 %v924, 64
    %v985 = vpop.permute.xlu0 %984
    %v987 = vadd.f32 %v972, %v985
    %989 = vrot.lane.b32.xlu0 %v987, 64
    %v990 = vpop.permute.xlu0 %989
    %v992 = vmul.f32 %v983, %v990
    %994 = vrot.lane.b32.xlu0 %v992, 64
    %v995 = vpop.permute.xlu0 %994
    %v997 = vadd.f32 %v885, %v995
    %v998 = vtanh.pop %v997
    %v999 = vsub.f32 1.0, %v983
    %1001 = vrot.lane.b32.xlu0 %v998, 96
    %v1002 = vpop.permute.xlu0 %1001
    %v1004 = vmul.f32 %v999, %v1002
    %v1005 = vmul.f32 %v983, 0.0
    %v1006 = vadd.f32 %v1004, %v1005
    %v1007 = vpack.c.bf16 %v1006, %v1006
    %1009 = vrot.lane.b32.xlu0 %v1007, 96
    %v1010 = vpop.permute.xlu0 %1009
    %v1012 = vsel %vm164, %v1010, 0
    %1014 = vmatprep.subr.bf16.mxu0 0
    %1015 = vmatpush1.bf16.msra.mxu0 0
    %1016 = vmatprep.subr.bf16.mxu0 0
    %1017 = vmatpush1.bf16.msra.mxu0 0
    %1018 = vmatprep.subr.bf16.mxu0 0
    %1019 = vmatpush1.bf16.msra.mxu0 0
    %1020 = vmatprep.subr.bf16.mxu0 0
    %1021 = vmatpush1.bf16.msra.mxu0 0
    %1022 = vmatprep.subr.bf16.mxu0 0
    %1023 = vmatpush1.bf16.msra.mxu0 0
    %1024 = vmatprep.subr.bf16.mxu0 0
    %1025 = vmatpush1.bf16.msra.mxu0 0
    %1026 = vmatprep.subr.bf16.mxu0 0
    %1027 = vmatpush1.bf16.msra.mxu0 %v934
    %1028 = vmatprep.subr.bf16.mxu0 0
    %1029 = vmatpush1.bf16.msra.mxu0 %v933
    %1030 = vmatprep.subr.bf16.mxu0 0
    %1031 = vmatpush2.bf16.msra.mxu0 0
    %1032 = vmatprep.subr.bf16.mxu0 0
    %1033 = vmatpush2.bf16.msra.mxu0 0
    %1034 = vmatprep.subr.bf16.mxu0 0
    %1035 = vmatpush2.bf16.msra.mxu0 0
    %1036 = vmatprep.subr.bf16.mxu0 0
    %1037 = vmatpush2.bf16.msra.mxu0 0
    %1038 = vmatprep.subr.bf16.mxu0 0
    %1039 = vmatpush2.bf16.msra.mxu0 0
    %1040 = vmatprep.subr.bf16.mxu0 0
    %1041 = vmatpush2.bf16.msra.mxu0 0
    %1042 = vmatprep.subr.bf16.mxu0 0
    %1043 = vmatpush2.bf16.msra.mxu0 0
    %1044 = vmatprep.subr.bf16.mxu0 0
    %1045 = vmatpush2.bf16.msra.mxu0 0
    %1046 = vmatprep.mubr.bf16.mxu0 0
    %1047 = vmatmul.mubr.bf16.gmra.mxu0 %v1012
    %v1048 = vpop.f32.mrf.mxu0
    %v1049 = vadd.f32 0.0, %v1048
    %v1050 = vpop.f32.mrf.mxu0
    %v1051 = vpop.f32.mrf.mxu0
    %v1052 = vpop.f32.mrf.mxu0
    %1053 = vdwg.mxu0
    %v1054 = vadd.f32 %v888, %v1049
    %v1055 = vxor.u32 %v1054, 2147483648
    %v1056 = vmul.f32 %v1055, 1.442695
    %v1057 = vpow.pop %v1056
    %v1058 = vadd.f32 %v1057, 1.0
    %v1059 = vrcp.pop %v1058
    %v1060 = vmul.f32 1.0, %v1059
    %v1061 = vadd.f32 %v1049, %v985
    %1063 = vrot.lane.b32.xlu0 %v1061, 64
    %v1064 = vpop.permute.xlu0 %1063
    %v1066 = vmul.f32 %v1060, %v1064
    %1068 = vrot.lane.b32.xlu0 %v1066, 64
    %v1069 = vpop.permute.xlu0 %1068
    %v1071 = vadd.f32 %v888, %v1069
    %v1072 = vtanh.pop %v1071
    %v1073 = vsub.f32 1.0, %v1060
    %1075 = vrot.lane.b32.xlu0 %v1072, 96
    %v1076 = vpop.permute.xlu0 %1075
    %v1078 = vmul.f32 %v1073, %v1076
    %v1079 = vmul.f32 %v1060, %v1006
    %v1080 = vadd.f32 %v1078, %v1079
    %v1081 = vpack.c.bf16 %v1080, %v1080
    %1083 = vrot.lane.b32.xlu0 %v1081, 96
    %v1084 = vpop.permute.xlu0 %1083
    %v1086 = vsel %vm164, %v1084, 0
    %1088 = vmatprep.subr.bf16.mxu0 0
    %1089 = vmatpush1.bf16.msra.mxu0 0
    %1090 = vmatprep.subr.bf16.mxu0 0
    %1091 = vmatpush1.bf16.msra.mxu0 0
    %1092 = vmatprep.subr.bf16.mxu0 0
    %1093 = vmatpush1.bf16.msra.mxu0 0
    %1094 = vmatprep.subr.bf16.mxu0 0
    %1095 = vmatpush1.bf16.msra.mxu0 0
    %1096 = vmatprep.subr.bf16.mxu0 0
    %1097 = vmatpush1.bf16.msra.mxu0 0
    %1098 = vmatprep.subr.bf16.mxu0 0
    %1099 = vmatpush1.bf16.msra.mxu0 0
    %1100 = vmatprep.subr.bf16.mxu0 0
    %1101 = vmatpush1.bf16.msra.mxu0 %v934
    %1102 = vmatprep.subr.bf16.mxu0 0
    %1103 = vmatpush1.bf16.msra.mxu0 %v933
    %1104 = vmatprep.subr.bf16.mxu0 0
    %1105 = vmatpush2.bf16.msra.mxu0 0
    %1106 = vmatprep.subr.bf16.mxu0 0
    %1107 = vmatpush2.bf16.msra.mxu0 0
    %1108 = vmatprep.subr.bf16.mxu0 0
    %1109 = vmatpush2.bf16.msra.mxu0 0
    %1110 = vmatprep.subr.bf16.mxu0 0
    %1111 = vmatpush2.bf16.msra.mxu0 0
    %1112 = vmatprep.subr.bf16.mxu0 0
    %1113 = vmatpush2.bf16.msra.mxu0 0
    %1114 = vmatprep.subr.bf16.mxu0 0
    %1115 = vmatpush2.bf16.msra.mxu0 0
    %1116 = vmatprep.subr.bf16.mxu0 0
    %1117 = vmatpush2.bf16.msra.mxu0 0
    %1118 = vmatprep.subr.bf16.mxu0 0
    %1119 = vmatpush2.bf16.msra.mxu0 0
    %1120 = vmatprep.mubr.bf16.mxu0 0
    %1121 = vmatmul.mubr.bf16.gmra.mxu0 %v1086
    %v1122 = vpop.f32.mrf.mxu0
    %v1123 = vadd.f32 0.0, %v1122
    %v1124 = vpop.f32.mrf.mxu0
    %v1125 = vpop.f32.mrf.mxu0
    %v1126 = vpop.f32.mrf.mxu0
    %1127 = vdwg.mxu0
    %v1128 = vadd.f32 %v893, %v1123
    %v1129 = vxor.u32 %v1128, 2147483648
    %v1130 = vmul.f32 %v1129, 1.442695
    %v1131 = vpow.pop %v1130
    %v1132 = vadd.f32 %v1131, 1.0
    %v1133 = vrcp.pop %v1132
    %v1134 = vmul.f32 1.0, %v1133
    %v1135 = vadd.f32 %v1123, %v985
    %1137 = vrot.lane.b32.xlu0 %v1135, 64
    %v1138 = vpop.permute.xlu0 %1137
    %v1140 = vmul.f32 %v1134, %v1138
    %1142 = vrot.lane.b32.xlu0 %v1140, 64
    %v1143 = vpop.permute.xlu0 %1142
    %v1145 = vadd.f32 %v893, %v1143
    %v1146 = vtanh.pop %v1145
    %v1147 = vsub.f32 1.0, %v1134
    %1149 = vrot.lane.b32.xlu0 %v1146, 96
    %v1150 = vpop.permute.xlu0 %1149
    %v1152 = vmul.f32 %v1147, %v1150
    %v1153 = vmul.f32 %v1134, %v1080
    %v1154 = vadd.f32 %v1152, %v1153
    %v1155 = vpack.c.bf16 %v1154, %v1154
    %1157 = vrot.lane.b32.xlu0 %v1155, 96
    %v1158 = vpop.permute.xlu0 %1157
    %v1160 = vsel %vm164, %v1158, 0
    %1162 = vmatprep.subr.bf16.mxu0 0
    %1163 = vmatpush1.bf16.msra.mxu0 0
    %1164 = vmatprep.subr.bf16.mxu0 0
    %1165 = vmatpush1.bf16.msra.mxu0 0
    %1166 = vmatprep.subr.bf16.mxu0 0
    %1167 = vmatpush1.bf16.msra.mxu0 0
    %1168 = vmatprep.subr.bf16.mxu0 0
    %1169 = vmatpush1.bf16.msra.mxu0 0
    %1170 = vmatprep.subr.bf16.mxu0 0
    %1171 = vmatpush1.bf16.msra.mxu0 0
    %1172 = vmatprep.subr.bf16.mxu0 0
    %1173 = vmatpush1.bf16.msra.mxu0 0
    %1174 = vmatprep.subr.bf16.mxu0 0
    %1175 = vmatpush1.bf16.msra.mxu0 %v934
    %1176 = vmatprep.subr.bf16.mxu0 0
    %1177 = vmatpush1.bf16.msra.mxu0 %v933
    %1178 = vmatprep.subr.bf16.mxu0 0
    %1179 = vmatpush2.bf16.msra.mxu0 0
    %1180 = vmatprep.subr.bf16.mxu0 0
    %1181 = vmatpush2.bf16.msra.mxu0 0
    %1182 = vmatprep.subr.bf16.mxu0 0
    %1183 = vmatpush2.bf16.msra.mxu0 0
    %1184 = vmatprep.subr.bf16.mxu0 0
    %1185 = vmatpush2.bf16.msra.mxu0 0
    %1186 = vmatprep.subr.bf16.mxu0 0
    %1187 = vmatpush2.bf16.msra.mxu0 0
    %1188 = vmatprep.subr.bf16.mxu0 0
    %1189 = vmatpush2.bf16.msra.mxu0 0
    %1190 = vmatprep.subr.bf16.mxu0 0
    %1191 = vmatpush2.bf16.msra.mxu0 0
    %1192 = vmatprep.subr.bf16.mxu0 0
    %1193 = vmatpush2.bf16.msra.mxu0 0
    %1194 = vmatprep.mubr.bf16.mxu0 0
    %1195 = vmatmul.mubr.bf16.gmra.mxu0 %v1160
    %v1196 = vpop.f32.mrf.mxu0
    %v1197 = vadd.f32 0.0, %v1196
    %v1198 = vpop.f32.mrf.mxu0
    %v1199 = vpop.f32.mrf.mxu0
    %v1200 = vpop.f32.mrf.mxu0
    %1201 = vdwg.mxu0
    %v1202 = vadd.f32 %v896, %v1197
    %v1203 = vxor.u32 %v1202, 2147483648
    %v1204 = vmul.f32 %v1203, 1.442695
    %v1205 = vpow.pop %v1204
    %v1206 = vadd.f32 %v1205, 1.0
    %v1207 = vrcp.pop %v1206
    %v1208 = vmul.f32 1.0, %v1207
    %v1209 = vadd.f32 %v1197, %v985
    %1211 = vrot.lane.b32.xlu0 %v1209, 64
    %v1212 = vpop.permute.xlu0 %1211
    %v1214 = vmul.f32 %v1208, %v1212
    %1216 = vrot.lane.b32.xlu0 %v1214, 64
    %v1217 = vpop.permute.xlu0 %1216
    %v1219 = vadd.f32 %v896, %v1217
    %v1220 = vtanh.pop %v1219
    %v1221 = vsub.f32 1.0, %v1208
    %1223 = vrot.lane.b32.xlu0 %v1220, 96
    %v1224 = vpop.permute.xlu0 %1223
    %v1226 = vmul.f32 %v1221, %v1224
    %v1227 = vmul.f32 %v1208, %v1154
    %v1228 = vadd.f32 %v1226, %v1227
    %v1229 = vpack.c.bf16 %v1228, %v1228
    %1231 = vrot.lane.b32.xlu0 %v1229, 96
    %v1232 = vpop.permute.xlu0 %1231
    %v1234 = vsel %vm164, %v1232, 0
    %1236 = vmatprep.subr.bf16.mxu0 0
    %1237 = vmatpush1.bf16.msra.mxu0 0
    %1238 = vmatprep.subr.bf16.mxu0 0
    %1239 = vmatpush1.bf16.msra.mxu0 0
    %1240 = vmatprep.subr.bf16.mxu0 0
    %1241 = vmatpush1.bf16.msra.mxu0 0
    %1242 = vmatprep.subr.bf16.mxu0 0
    %1243 = vmatpush1.bf16.msra.mxu0 0
    %1244 = vmatprep.subr.bf16.mxu0 0
    %1245 = vmatpush1.bf16.msra.mxu0 0
    %1246 = vmatprep.subr.bf16.mxu0 0
    %1247 = vmatpush1.bf16.msra.mxu0 0
    %1248 = vmatprep.subr.bf16.mxu0 0
    %1249 = vmatpush1.bf16.msra.mxu0 %v934
    %1250 = vmatprep.subr.bf16.mxu0 0
    %1251 = vmatpush1.bf16.msra.mxu0 %v933
    %1252 = vmatprep.subr.bf16.mxu0 0
    %1253 = vmatpush2.bf16.msra.mxu0 0
    %1254 = vmatprep.subr.bf16.mxu0 0
    %1255 = vmatpush2.bf16.msra.mxu0 0
    %1256 = vmatprep.subr.bf16.mxu0 0
    %1257 = vmatpush2.bf16.msra.mxu0 0
    %1258 = vmatprep.subr.bf16.mxu0 0
    %1259 = vmatpush2.bf16.msra.mxu0 0
    %1260 = vmatprep.subr.bf16.mxu0 0
    %1261 = vmatpush2.bf16.msra.mxu0 0
    %1262 = vmatprep.subr.bf16.mxu0 0
    %1263 = vmatpush2.bf16.msra.mxu0 0
    %1264 = vmatprep.subr.bf16.mxu0 0
    %1265 = vmatpush2.bf16.msra.mxu0 0
    %1266 = vmatprep.subr.bf16.mxu0 0
    %1267 = vmatpush2.bf16.msra.mxu0 0
    %1268 = vmatprep.mubr.bf16.mxu0 0
    %1269 = vmatmul.mubr.bf16.gmra.mxu0 %v1234
    %v1270 = vpop.f32.mrf.mxu0
    %v1271 = vadd.f32 0.0, %v1270
    %v1272 = vpop.f32.mrf.mxu0
    %v1273 = vpop.f32.mrf.mxu0
    %v1274 = vpop.f32.mrf.mxu0
    %1275 = vdwg.mxu0
    %v1276 = vadd.f32 %v901, %v1271
    %v1277 = vxor.u32 %v1276, 2147483648
    %v1278 = vmul.f32 %v1277, 1.442695
    %v1279 = vpow.pop %v1278
    %v1280 = vadd.f32 %v1279, 1.0
    %v1281 = vrcp.pop %v1280
    %v1282 = vmul.f32 1.0, %v1281
    %v1283 = vadd.f32 %v1271, %v985
    %1285 = vrot.lane.b32.xlu0 %v1283, 64
    %v1286 = vpop.permute.xlu0 %1285
    %v1288 = vmul.f32 %v1282, %v1286
    %1290 = vrot.lane.b32.xlu0 %v1288, 64
    %v1291 = vpop.permute.xlu0 %1290
    %v1293 = vadd.f32 %v901, %v1291
    %v1294 = vtanh.pop %v1293
    %v1295 = vsub.f32 1.0, %v1282
    %1297 = vrot.lane.b32.xlu0 %v1294, 96
    %v1298 = vpop.permute.xlu0 %1297
    %v1300 = vmul.f32 %v1295, %v1298
    %v1301 = vmul.f32 %v1282, %v1228
    %v1302 = vadd.f32 %v1300, %v1301
    %v1303 = vpack.c.bf16 %v1302, %v1302
    %1305 = vrot.lane.b32.xlu0 %v1303, 96
    %v1306 = vpop.permute.xlu0 %1305
    %v1308 = vsel %vm164, %v1306, 0
    %1310 = vmatprep.subr.bf16.mxu0 0
    %1311 = vmatpush1.bf16.msra.mxu0 0
    %1312 = vmatprep.subr.bf16.mxu0 0
    %1313 = vmatpush1.bf16.msra.mxu0 0
    %1314 = vmatprep.subr.bf16.mxu0 0
    %1315 = vmatpush1.bf16.msra.mxu0 0
    %1316 = vmatprep.subr.bf16.mxu0 0
    %1317 = vmatpush1.bf16.msra.mxu0 0
    %1318 = vmatprep.subr.bf16.mxu0 0
    %1319 = vmatpush1.bf16.msra.mxu0 0
    %1320 = vmatprep.subr.bf16.mxu0 0
    %1321 = vmatpush1.bf16.msra.mxu0 0
    %1322 = vmatprep.subr.bf16.mxu0 0
    %1323 = vmatpush1.bf16.msra.mxu0 %v934
    %1324 = vmatprep.subr.bf16.mxu0 0
    %1325 = vmatpush1.bf16.msra.mxu0 %v933
    %1326 = vmatprep.subr.bf16.mxu0 0
    %1327 = vmatpush2.bf16.msra.mxu0 0
    %1328 = vmatprep.subr.bf16.mxu0 0
    %1329 = vmatpush2.bf16.msra.mxu0 0
    %1330 = vmatprep.subr.bf16.mxu0 0
    %1331 = vmatpush2.bf16.msra.mxu0 0
    %1332 = vmatprep.subr.bf16.mxu0 0
    %1333 = vmatpush2.bf16.msra.mxu0 0
    %1334 = vmatprep.subr.bf16.mxu0 0
    %1335 = vmatpush2.bf16.msra.mxu0 0
    %1336 = vmatprep.subr.bf16.mxu0 0
    %1337 = vmatpush2.bf16.msra.mxu0 0
    %1338 = vmatprep.subr.bf16.mxu0 0
    %1339 = vmatpush2.bf16.msra.mxu0 0
    %1340 = vmatprep.subr.bf16.mxu0 0
    %1341 = vmatpush2.bf16.msra.mxu0 0
    %1342 = vmatprep.mubr.bf16.mxu0 0
    %1343 = vmatmul.mubr.bf16.gmra.mxu0 %v1308
    %v1344 = vpop.f32.mrf.mxu0
    %v1345 = vadd.f32 0.0, %v1344
    %v1346 = vpop.f32.mrf.mxu0
    %v1347 = vpop.f32.mrf.mxu0
    %v1348 = vpop.f32.mrf.mxu0
    %1349 = vdwg.mxu0
    %v1350 = vadd.f32 %v904, %v1345
    %v1351 = vxor.u32 %v1350, 2147483648
    %v1352 = vmul.f32 %v1351, 1.442695
    %v1353 = vpow.pop %v1352
    %v1354 = vadd.f32 %v1353, 1.0
    %v1355 = vrcp.pop %v1354
    %v1356 = vmul.f32 1.0, %v1355
    %v1357 = vadd.f32 %v1345, %v985
    %1359 = vrot.lane.b32.xlu0 %v1357, 64
    %v1360 = vpop.permute.xlu0 %1359
    %v1362 = vmul.f32 %v1356, %v1360
    %1364 = vrot.lane.b32.xlu0 %v1362, 64
    %v1365 = vpop.permute.xlu0 %1364
    %v1367 = vadd.f32 %v904, %v1365
    %v1368 = vtanh.pop %v1367
    %v1369 = vsub.f32 1.0, %v1356
    %1371 = vrot.lane.b32.xlu0 %v1368, 96
    %v1372 = vpop.permute.xlu0 %1371
    %v1374 = vmul.f32 %v1369, %v1372
    %v1375 = vmul.f32 %v1356, %v1302
    %v1376 = vadd.f32 %v1374, %v1375
    %v1377 = vpack.c.bf16 %v1376, %v1376
    %1379 = vrot.lane.b32.xlu0 %v1377, 96
    %v1380 = vpop.permute.xlu0 %1379
    %v1382 = vsel %vm164, %v1380, 0
    %1384 = vmatprep.subr.bf16.mxu0 0
    %1385 = vmatpush1.bf16.msra.mxu0 0
    %1386 = vmatprep.subr.bf16.mxu0 0
    %1387 = vmatpush1.bf16.msra.mxu0 0
    %1388 = vmatprep.subr.bf16.mxu0 0
    %1389 = vmatpush1.bf16.msra.mxu0 0
    %1390 = vmatprep.subr.bf16.mxu0 0
    %1391 = vmatpush1.bf16.msra.mxu0 0
    %1392 = vmatprep.subr.bf16.mxu0 0
    %1393 = vmatpush1.bf16.msra.mxu0 0
    %1394 = vmatprep.subr.bf16.mxu0 0
    %1395 = vmatpush1.bf16.msra.mxu0 0
    %1396 = vmatprep.subr.bf16.mxu0 0
    %1397 = vmatpush1.bf16.msra.mxu0 %v934
    %1398 = vmatprep.subr.bf16.mxu0 0
    %1399 = vmatpush1.bf16.msra.mxu0 %v933
    %1400 = vmatprep.subr.bf16.mxu0 0
    %1401 = vmatpush2.bf16.msra.mxu0 0
    %1402 = vmatprep.subr.bf16.mxu0 0
    %1403 = vmatpush2.bf16.msra.mxu0 0
    %1404 = vmatprep.subr.bf16.mxu0 0
    %1405 = vmatpush2.bf16.msra.mxu0 0
    %1406 = vmatprep.subr.bf16.mxu0 0
    %1407 = vmatpush2.bf16.msra.mxu0 0
    %1408 = vmatprep.subr.bf16.mxu0 0
    %1409 = vmatpush2.bf16.msra.mxu0 0
    %1410 = vmatprep.subr.bf16.mxu0 0
    %1411 = vmatpush2.bf16.msra.mxu0 0
    %1412 = vmatprep.subr.bf16.mxu0 0
    %1413 = vmatpush2.bf16.msra.mxu0 0
    %1414 = vmatprep.subr.bf16.mxu0 0
    %1415 = vmatpush2.bf16.msra.mxu0 0
    %1416 = vmatprep.mubr.bf16.mxu0 0
    %1417 = vmatmul.mubr.bf16.gmra.mxu0 %v1382
    %v1418 = vpop.f32.mrf.mxu0
    %v1419 = vadd.f32 0.0, %v1418
    %v1420 = vpop.f32.mrf.mxu0
    %v1421 = vpop.f32.mrf.mxu0
    %v1422 = vpop.f32.mrf.mxu0
    %1423 = vdwg.mxu0
    %v1424 = vadd.f32 %v909, %v1419
    %v1425 = vxor.u32 %v1424, 2147483648
    %v1426 = vmul.f32 %v1425, 1.442695
    %v1427 = vpow.pop %v1426
    %v1428 = vadd.f32 %v1427, 1.0
    %v1429 = vrcp.pop %v1428
    %v1430 = vmul.f32 1.0, %v1429
    %v1431 = vadd.f32 %v1419, %v985
    %1433 = vrot.lane.b32.xlu0 %v1431, 64
    %v1434 = vpop.permute.xlu0 %1433
    %v1436 = vmul.f32 %v1430, %v1434
    %1438 = vrot.lane.b32.xlu0 %v1436, 64
    %v1439 = vpop.permute.xlu0 %1438
    %v1441 = vadd.f32 %v909, %v1439
    %v1442 = vtanh.pop %v1441
    %v1443 = vsub.f32 1.0, %v1430
    %1445 = vrot.lane.b32.xlu0 %v1442, 96
    %v1446 = vpop.permute.xlu0 %1445
    %v1448 = vmul.f32 %v1443, %v1446
    %v1449 = vmul.f32 %v1430, %v1376
    %v1450 = vadd.f32 %v1448, %v1449
    %v1451 = vpack.c.bf16 %v1450, %v1450
    %1453 = vrot.lane.b32.xlu0 %v1451, 96
    %v1454 = vpop.permute.xlu0 %1453
    %v1456 = vsel %vm164, %v1454, 0
    %1458 = vmatprep.subr.bf16.mxu0 0
    %1459 = vmatpush1.bf16.msra.mxu0 0
    %1460 = vmatprep.subr.bf16.mxu0 0
    %1461 = vmatpush1.bf16.msra.mxu0 0
    %1462 = vmatprep.subr.bf16.mxu0 0
    %1463 = vmatpush1.bf16.msra.mxu0 0
    %1464 = vmatprep.subr.bf16.mxu0 0
    %1465 = vmatpush1.bf16.msra.mxu0 0
    %1466 = vmatprep.subr.bf16.mxu0 0
    %1467 = vmatpush1.bf16.msra.mxu0 0
    %1468 = vmatprep.subr.bf16.mxu0 0
    %1469 = vmatpush1.bf16.msra.mxu0 0
    %1470 = vmatprep.subr.bf16.mxu0 0
    %1471 = vmatpush1.bf16.msra.mxu0 %v934
    %1472 = vmatprep.subr.bf16.mxu0 0
    %1473 = vmatpush1.bf16.msra.mxu0 %v933
    %1474 = vmatprep.subr.bf16.mxu0 0
    %1475 = vmatpush2.bf16.msra.mxu0 0
    %1476 = vmatprep.subr.bf16.mxu0 0
    %1477 = vmatpush2.bf16.msra.mxu0 0
    %1478 = vmatprep.subr.bf16.mxu0 0
    %1479 = vmatpush2.bf16.msra.mxu0 0
    %1480 = vmatprep.subr.bf16.mxu0 0
    %1481 = vmatpush2.bf16.msra.mxu0 0
    %1482 = vmatprep.subr.bf16.mxu0 0
    %1483 = vmatpush2.bf16.msra.mxu0 0
    %1484 = vmatprep.subr.bf16.mxu0 0
    %1485 = vmatpush2.bf16.msra.mxu0 0
    %1486 = vmatprep.subr.bf16.mxu0 0
    %1487 = vmatpush2.bf16.msra.mxu0 0
    %1488 = vmatprep.subr.bf16.mxu0 0
    %1489 = vmatpush2.bf16.msra.mxu0 0
    %1490 = vmatprep.mubr.bf16.mxu0 0
    %1491 = vmatmul.mubr.bf16.gmra.mxu0 %v1456
    %v1492 = vpop.f32.mrf.mxu0
    %v1493 = vadd.f32 0.0, %v1492
    %v1494 = vpop.f32.mrf.mxu0
    %v1495 = vpop.f32.mrf.mxu0
    %v1496 = vpop.f32.mrf.mxu0
    %1497 = vdwg.mxu0
    %v1498 = vadd.f32 %v912, %v1493
    %v1499 = vxor.u32 %v1498, 2147483648
    %v1500 = vmul.f32 %v1499, 1.442695
    %v1501 = vpow.pop %v1500
    %v1502 = vadd.f32 %v1501, 1.0
    %v1503 = vrcp.pop %v1502
    %v1504 = vmul.f32 1.0, %v1503
    %v1505 = vadd.f32 %v1493, %v985
    %1507 = vrot.lane.b32.xlu0 %v1505, 64
    %v1508 = vpop.permute.xlu0 %1507
    %v1510 = vmul.f32 %v1504, %v1508
    %1512 = vrot.lane.b32.xlu0 %v1510, 64
    %v1513 = vpop.permute.xlu0 %1512
    %v1515 = vadd.f32 %v912, %v1513
    %v1516 = vtanh.pop %v1515
    %v1517 = vsub.f32 1.0, %v1504
    %1519 = vrot.lane.b32.xlu0 %v1516, 96
    %v1520 = vpop.permute.xlu0 %1519
    %v1522 = vmul.f32 %v1517, %v1520
    %v1523 = vmul.f32 %v1504, %v1450
    %v1524 = vadd.f32 %v1522, %v1523
    %v1525 = vpack.c.bf16 %v1524, %v1524
    %v1526 = vld [vmem:[%s9] sm:$0xf]
    %v1527 = vld [vmem:[%s9 + $0x4] sm:$0xf]
    %v1528 = vld [vmem:[%s9 + $0x8] sm:$0xf]
    %v1529 = vld [vmem:[%s9 + $0xc] sm:$0xf]
    %v1530 = vld [vmem:[%s10] sm:$0x1]
    %v1532 = vlaneseq
    %v1533 = vshrl.u32 %v1532, 7
    %v1534 = vsub.s32 0, %v1533
    %v1535 = vrot.slane %v1530, %v1534
    %1538 = vrot.lane.b32.xlu0 %v1525, 96
    %v1539 = vpop.permute.xlu0 %1538
    %v1544 = vunpack.c.l.b16 %v1526
    %v1545 = vunpack.c.l.b16 %v1527
    %v1546 = vunpack.c.l.b16 %v1528
    %v1547 = vunpack.c.l.b16 %v1529
    %v1548 = vpack.c.b16 %v1545, %v1544
    %v1549 = vpack.c.b16 %v1547, %v1546
    %v1553 = vsel %vm164, %v1539, 0
    %1555 = vmatprep.subr.bf16.mxu0 0
    %1556 = vmatpush1.bf16.msra.mxu0 0
    %1557 = vmatprep.subr.bf16.mxu0 0
    %1558 = vmatpush1.bf16.msra.mxu0 0
    %1559 = vmatprep.subr.bf16.mxu0 0
    %1560 = vmatpush1.bf16.msra.mxu0 0
    %1561 = vmatprep.subr.bf16.mxu0 0
    %1562 = vmatpush1.bf16.msra.mxu0 0
    %1563 = vmatprep.subr.bf16.mxu0 0
    %1564 = vmatpush1.bf16.msra.mxu0 0
    %1565 = vmatprep.subr.bf16.mxu0 0
    %1566 = vmatpush1.bf16.msra.mxu0 0
    %1567 = vmatprep.subr.bf16.mxu0 0
    %1568 = vmatpush1.bf16.msra.mxu0 %v1549
    %1569 = vmatprep.subr.bf16.mxu0 0
    %1570 = vmatpush1.bf16.msra.mxu0 %v1548
    %1571 = vmatprep.subr.bf16.mxu0 0
    %1572 = vmatpush2.bf16.msra.mxu0 0
    %1573 = vmatprep.subr.bf16.mxu0 0
    %1574 = vmatpush2.bf16.msra.mxu0 0
    %1575 = vmatprep.subr.bf16.mxu0 0
    %1576 = vmatpush2.bf16.msra.mxu0 0
    %1577 = vmatprep.subr.bf16.mxu0 0
    %1578 = vmatpush2.bf16.msra.mxu0 0
    %1579 = vmatprep.subr.bf16.mxu0 0
    %1580 = vmatpush2.bf16.msra.mxu0 0
    %1581 = vmatprep.subr.bf16.mxu0 0
    %1582 = vmatpush2.bf16.msra.mxu0 0
    %1583 = vmatprep.subr.bf16.mxu0 0
    %1584 = vmatpush2.bf16.msra.mxu0 0
    %1585 = vmatprep.subr.bf16.mxu0 0
    %1586 = vmatpush2.bf16.msra.mxu0 0
    %1587 = vmatprep.mubr.bf16.mxu0 0
    %1588 = vmatmul.mubr.bf16.gmra.mxu0 %v1553
    %v1589 = vpop.f32.mrf.mxu0
    %v1590 = vadd.f32 %v1535, %v1589
    %v1591 = vpop.f32.mrf.mxu0
    %v1592 = vpop.f32.mrf.mxu0
    %v1593 = vpop.f32.mrf.mxu0
    %1594 = vdwg.mxu0
    %1595 = vst [vmem:[#allocation3] sm:$0xff] %v1590
    // Predicated region
    $region46: #{tpu_custom_call.1} parent=1 // pred_check
      _
    $region47: #{tpu_custom_call.1} parent=1 // pred_check_branch
      %1597 = sbr.rel (0) target = $region49
    $region48: #{tpu_custom_call.1} parent=1 // pred_region
      %s1599 = ssub.s32 128, 128
      %1600 = vsyncadd [#allocation4], %s1599
      %s1602 = sshll.u32 [#allocation3], 4
      %s1603 = int_to_ptr.vmem [resolvable:$true] %s1602
      %1605 = dma.vmem_to_hbm [thread:$0]  %s1603, 128, %s11, [#allocation4]
    $region49: #{tpu_custom_call.1} parent=1 // pred_fallthru
      _
    // Predicated region
    $region50: #{tpu_custom_call.1} parent=1 // pred_check
      _
    $region51: #{tpu_custom_call.1} parent=1 // pred_check_branch
      %1607 = sbr.rel (0) target = $region53
    $region52: #{tpu_custom_call.1} parent=1 // pred_region
      %1608 = dma.done [#allocation4], 128
    $region53: #{tpu_custom_call.1} parent=1 // pred_fallthru
      _
    %1609 = vsyncpa [#allocation4], 1

</llo_original>
